<compile_context>
chip_gen: v5e
topology: v5e:2x2
jax: 0.10.0
libtpu: 0.0.40
codegen_flags: <defaults>
</compile_context>

<pallas_src>
import math

import numpy as np
import jax
import jax.numpy as jnp
from jax import lax
from jax.experimental import pallas as pl
from jax.experimental.pallas import tpu as pltpu


# ----------------------------------------------------------------------------
# bilinear (align_corners=True) helpers -- static, evaluated at trace time
# ----------------------------------------------------------------------------
def _lin_coords(out_size, in_size):
    coords = []
    for i in range(out_size):
        src = 0.0 if out_size == 1 else i * (in_size - 1) / (out_size - 1)
        i0 = int(math.floor(src))
        i1 = min(i0 + 1, in_size - 1)
        coords.append((i0, i1, float(src - i0)))
    return coords


def _interp_matrix(out_size, in_size):
    m = np.zeros((out_size, in_size), np.float32)
    for i, (i0, i1, f) in enumerate(_lin_coords(out_size, in_size)):
        m[i, i0] += 1.0 - f
        m[i, i1] += f
    return m


# ----------------------------------------------------------------------------
# host-side operator construction (wrapper, traced once)
# ----------------------------------------------------------------------------
def _band_matrix(taps, n):
    """(n, n) banded matrix B with B[j + (k-3), j] = taps[k]."""
    m = jnp.zeros((n, n), jnp.float32)
    for k in range(7):
        m = m + taps[k] * jnp.asarray(np.eye(n, k=-(k - 3), dtype=np.float32))
    return m


def _spatial_conv_ops(w1, b1, w2_, b2, h2, w2):
    """Band-matrix form of the (1,7) and (7,1) convs on flat (p*W2+q) index."""
    s2 = h2 * w2
    eye_h = jnp.asarray(np.eye(h2, dtype=np.float32))
    eye_w = jnp.asarray(np.eye(w2, dtype=np.float32))
    rows1, rows2 = [], []
    for i in range(2):                       # input channel (0=max, 1=mean)
        blk1, blk2 = [], []
        for o in range(2):                   # output channel
            blk1.append(jnp.kron(eye_h, _band_matrix(w1[o, i, 0, :], w2)))
            blk2.append(jnp.kron(_band_matrix(w2_[o, i, :, 0], h2), eye_w))
        rows1.append(jnp.concatenate(blk1, axis=1))
        rows2.append(jnp.concatenate(blk2, axis=1))
    B1 = jnp.concatenate(rows1, axis=0)      # (2*S2, 2*S2)
    B2 = jnp.concatenate(rows2, axis=0)      # (2*S2, 2*S2)
    b1row = jnp.concatenate([jnp.full((1, s2), b1[0], jnp.float32),
                             jnp.full((1, s2), b1[1], jnp.float32)], axis=1)
    b2row = jnp.concatenate([jnp.full((1, s2), b2[0], jnp.float32),
                             jnp.full((1, s2), b2[1], jnp.float32)], axis=1)
    return B1, b1row, B2, b2row


def _deconv_scatter_stack(h2, w2):
    """(9, S2, H*W) stack of 0/1 scatter maps, tap t = kh*3 + kw, for the
    stride-2 / pad-1 / output_padding-1 transposed 3x3 conv:
    out[oh, ow] gets input[p, q] when oh = 2p + kh - 1, ow = 2q + kw - 1."""
    H, W = 2 * h2, 2 * w2
    mats = []
    for kh in range(3):
        r = np.zeros((h2, H), np.float32)
        for p in range(h2):
            oh = 2 * p + kh - 1
            if 0 <= oh < H:
                r[p, oh] = 1.0
        for kw in range(3):
            cmat = np.zeros((w2, W), np.float32)
            for q in range(w2):
                ow = 2 * q + kw - 1
                if 0 <= ow < W:
                    cmat[q, ow] = 1.0
            mats.append(np.kron(r, cmat))
    return np.stack(mats, axis=0)            # (9, S2, H*W)


# ----------------------------------------------------------------------------
# Pallas kernel: full SCAB forward, batch folded into the matmul M dimension
# ----------------------------------------------------------------------------
def scab_kernel(x_ref, y_ref, fc1t_ref, fc2t_ref, b1m_ref, b1b_ref, b2m_ref,
                b2b_ref, dmat_ref, umat_ref, kstk_ref, tstk_ref, upb_ref,
                eb_ref, ebt_ref, ec_ref, o_ref):
    nc, hw = x_ref.shape                       # N*C, H*W
    s2 = y_ref.shape[1]                        # H2*W2
    n = eb_ref.shape[1]                        # batch
    c = ec_ref.shape[1]                        # channels

    x = x_ref[...]                             # (NC, HW) lane-dense
    y = y_ref[...]                             # (NC, S2)
    eb = eb_ref[...]                           # (NC, N)  0/1: row -> batch
    ebt = ebt_ref[...]                         # (N, NC)
    ec = ec_ref[...]                           # (NC, C)  0/1: row -> channel

    # ---- bilinear 0.5x downsample: one matmul with kron(Ah, Aw)^T ----------
    x_down = jnp.dot(x, dmat_ref[...], preferred_element_type=jnp.float32)
    attn = x_down + y                          # (NC, S2)

    # ---- channel attention: avg pool -> fc1 -> relu -> fc2 -> pair softmax -
    pooled_col = jnp.sum(attn, axis=1, keepdims=True) * (1.0 / s2)   # (NC, 1)
    # fold (NC,1) -> (N,C) with 0/1 selection matmuls (no in-kernel reshape)
    pooled_nc = jnp.dot(ebt, pooled_col * ec,
                        preferred_element_type=jnp.float32)          # (N, C)
    hdn = jnp.maximum(
        jnp.dot(pooled_nc, fc1t_ref[...], preferred_element_type=jnp.float32),
        0.0)                                                          # (N, C)
    z = jnp.dot(hdn, fc2t_ref[...], preferred_element_type=jnp.float32)  # (N,2C)
    a0, a1 = z[:, :c], z[:, c:]
    mch = jnp.maximum(a0, a1)
    e0, e1 = jnp.exp(a0 - mch), jnp.exp(a1 - mch)
    cden = e0 + e1
    wc0, wc1 = e0 / cden, e1 / cden            # (N, C)  exact softmax
    # unfold (N,C) -> (NC,1)
    wc0_col = jnp.sum(jnp.dot(eb, wc0, preferred_element_type=jnp.float32) * ec,
                      axis=1, keepdims=True)
    wc1_col = jnp.sum(jnp.dot(eb, wc1, preferred_element_type=jnp.float32) * ec,
                      axis=1, keepdims=True)

    # ---- spatial attention: per-batch channel max/mean -> band-matmul convs -
    s_mean = jnp.dot(ebt, attn, preferred_element_type=jnp.float32) * (1.0 / c)
    s_max = jnp.concatenate(
        [jnp.max(attn[b * c:(b + 1) * c, :], axis=0, keepdims=True)
         for b in range(n)], axis=0)                                  # (N, S2)
    srow = jnp.concatenate([s_max, s_mean], axis=1)                   # (N, 2*S2)
    c1 = jnp.maximum(
        jnp.dot(srow, b1m_ref[...], preferred_element_type=jnp.float32)
        + b1b_ref[...], 0.0)
    c2 = (jnp.dot(c1, b2m_ref[...], preferred_element_type=jnp.float32)
          + b2b_ref[...])
    sa0, sa1 = c2[:, :s2], c2[:, s2:]
    msp = jnp.maximum(sa0, sa1)
    f0, f1 = jnp.exp(sa0 - msp), jnp.exp(sa1 - msp)
    sden = f0 + f1
    attn_s1, attn_s2 = f0 / sden, f1 / sden                           # (N, S2)

    # ---- bilinear 2x upsample of attn_s1: one matmul with kron(Uh, Uw)^T ---
    s1_up = jnp.dot(attn_s1, umat_ref[...],
                    preferred_element_type=jnp.float32)               # (N, HW)

    # ---- gating (lane-dense elementwise; per-batch rows expanded by matmul) -
    x_new = x * (wc0_col + jnp.dot(eb, s1_up,
                                   preferred_element_type=jnp.float32))
    y_mid = y * (wc1_col + jnp.dot(eb, attn_s2,
                                   preferred_element_type=jnp.float32))

    # ---- ConvTranspose2d(C, C, 3, stride=2, pad=1, out_pad=1) --------------
    # One stacked channel-mix matmul, then 9 accumulating scatter matmuls on
    # 8-sublane-aligned slices (no lane concatenation).
    zstk = jnp.dot(kstk_ref[...], y_mid,
                   preferred_element_type=jnp.float32)                # (9*NC, S2)
    acc = jnp.dot(zstk[0:nc, :], tstk_ref[0],
                  preferred_element_type=jnp.float32)                 # (NC, HW)
    for t in range(1, 9):
        acc = acc + jnp.dot(zstk[t * nc:(t + 1) * nc, :], tstk_ref[t],
                            preferred_element_type=jnp.float32)
    y_up = acc + upb_ref[...]                                         # (NC, HW)

    o_ref[...] = x_new + y_up                                         # lane-dense


# ----------------------------------------------------------------------------
# wrapper
# ----------------------------------------------------------------------------
@jax.jit
def scab_forward(x, y, raw):
    n, c, h, w = x.shape
    h2, w2 = y.shape[2], y.shape[3]
    hw, s2, nc = h * w, h2 * w2, n * c

    # weight-independent operators (host numpy constants)
    Ah, Aw = _interp_matrix(h2, h), _interp_matrix(w2, w)
    Uh, Uw = _interp_matrix(h, h2), _interp_matrix(w, w2)
    dmat = jnp.asarray(np.kron(Ah, Aw).T)                  # (H*W, S2)
    umat = jnp.asarray(np.kron(Uh, Uw).T)                  # (S2, H*W)
    tstk = jnp.asarray(_deconv_scatter_stack(h2, w2))      # (9, S2, H*W)

    # 0/1 batch/channel selection matrices (fold/unfold without reshapes)
    eyn = np.eye(n, dtype=np.float32)
    eb = jnp.asarray(np.kron(eyn, np.ones((c, 1), np.float32)))    # (NC, N)
    ebt = jnp.asarray(np.kron(eyn, np.ones((1, c), np.float32)))   # (N, NC)
    ec = jnp.asarray(np.kron(np.ones((n, 1), np.float32),
                             np.eye(c, dtype=np.float32)))         # (NC, C)

    # weight-dependent operators
    B1, b1row, B2, b2row = _spatial_conv_ops(
        raw['w1_eff'], raw['b1_eff'], raw['w2_eff'], raw['b2_eff'], h2, w2)
    fc1_t = raw['fc1_w'].T                                 # (C, C)
    fc2_t = raw['fc2_w'].T                                 # (C, 2C)
    # deconv taps: one stacked block-diagonal channel-mix matrix (9*NC, NC)
    wtaps = [raw['up_w'][:, :, kh, kw].T                   # (C_out, C_in)
             for kh in range(3) for kw in range(3)]
    kstk = jnp.concatenate([jnp.kron(jnp.asarray(eyn), wt) for wt in wtaps],
                           axis=0)                         # (9*NC, NC)
    upb_col = jnp.tile(raw['up_b'], (n,))[:, None]         # (NC, 1)

    x_flat = x.reshape(nc, hw)
    y_flat = y.reshape(nc, s2)

    vmem = pl.BlockSpec(memory_space=pltpu.MemorySpace.VMEM)

    out_flat = pl.pallas_call(
        scab_kernel,
        out_shape=jax.ShapeDtypeStruct((nc, hw), jnp.float32),
        in_specs=[vmem] * 16,
        out_specs=vmem,
        compiler_params=pltpu.CompilerParams(
            vmem_limit_bytes=32 * 1024 * 1024),
    )(x_flat, y_flat, fc1_t, fc2_t, B1, b1row, B2, b2row,
      dmat, umat, kstk, tstk, upb_col, eb, ebt, ec)

    return out_flat.reshape(n, c, h, w)


# ----------------------------------------------------------------------------
# deterministic parameter init (fresh-module shapes; BN eval-mode folded)
# ----------------------------------------------------------------------------
def init_params(key, c):
    ks = jax.random.split(key, 8)
    fc1_w = 0.3 * jax.random.normal(ks[0], (c, c), jnp.float32)
    fc2_w = 0.3 * jax.random.normal(ks[1], (2 * c, c), jnp.float32)
    conv1_w = 0.3 * jax.random.normal(ks[2], (2, 2, 1, 7), jnp.float32)
    conv1_b = 0.1 * jax.random.normal(ks[3], (2,), jnp.float32)
    conv2_w = 0.3 * jax.random.normal(ks[4], (2, 2, 7, 1), jnp.float32)
    conv2_b = 0.1 * jax.random.normal(ks[5], (2,), jnp.float32)
    up_w = 0.3 * jax.random.normal(ks[6], (c, c, 3, 3), jnp.float32)
    up_b = 0.1 * jax.random.normal(ks[7], (c,), jnp.float32)

    # fold eval-mode BatchNorm (gamma=1, beta=0, mean=0, var=1, eps=1e-5)
    bn_scale = 1.0 / math.sqrt(1.0 + 1e-5)
    return dict(fc1_w=fc1_w, fc2_w=fc2_w,
                w1_eff=conv1_w * bn_scale, b1_eff=conv1_b * bn_scale,
                w2_eff=conv2_w * bn_scale, b2_eff=conv2_b * bn_scale,
                up_w=up_w, up_b=up_b)


# ----------------------------------------------------------------------------
# pure-JAX reference (for a numerical sanity check)
# ----------------------------------------------------------------------------
def scab_reference(x, y, p):
    n, c, h, w = x.shape
    h2, w2 = y.shape[2], y.shape[3]
    dn = ('NCHW', 'OIHW', 'NCHW')

    Ah, Aw = _interp_matrix(h2, h), _interp_matrix(w2, w)
    xd = jnp.einsum('pi,ncij->ncpj', Ah, x)
    xd = jnp.einsum('qj,ncpj->ncpq', Aw, xd)
    attn = xd + y

    pooled = jnp.mean(attn, axis=(2, 3))                     # (n, c)
    hdn = jax.nn.relu(pooled @ p['fc1_w'].T)
    z = hdn @ p['fc2_w'].T                                   # (n, 2c)
    ac = jax.nn.softmax(z.reshape(n, 2, c), axis=1)
    x_c = x * ac[:, 0][:, :, None, None]
    y_c = y * ac[:, 1][:, :, None, None]

    s = jnp.concatenate([jnp.max(attn, axis=1, keepdims=True),
                         jnp.mean(attn, axis=1, keepdims=True)], axis=1)
    s = lax.conv_general_dilated(s, p['w1_eff'], (1, 1), [(0, 0), (3, 3)],
                                 dimension_numbers=dn) + p['b1_eff'][None, :, None, None]
    s = jax.nn.relu(s)
    s = lax.conv_general_dilated(s, p['w2_eff'], (1, 1), [(3, 3), (0, 0)],
                                 dimension_numbers=dn) + p['b2_eff'][None, :, None, None]
    s = jax.nn.softmax(s, axis=1)
    s1, s2 = s[:, 0:1], s[:, 1:2]

    Uh, Uw = _interp_matrix(h, h2), _interp_matrix(w, w2)
    s1u = jnp.einsum('pi,ncij->ncpj', Uh, s1)
    s1u = jnp.einsum('qj,ncpj->ncpq', Uw, s1u)

    x_new = x_c + x * s1u
    y_mid = y_c + y * s2

    K = jnp.flip(jnp.transpose(p['up_w'], (1, 0, 2, 3)), axis=(2, 3))
    y_up = lax.conv_general_dilated(y_mid, K, (1, 1), [(1, 2), (1, 2)],
                                    lhs_dilation=(2, 2),
                                    dimension_numbers=dn) + p['up_b'][None, :, None, None]
    return x_new + y_up


if __name__ == "__main__":
    key = jax.random.PRNGKey(0)
    kx, ky, kp = jax.random.split(key, 3)

    n, c, h, w = 2, 4, 16, 16
    h2, w2 = h // 2, w // 2
    x = jax.random.normal(kx, (n, c, h, w), jnp.float32)
    y = jax.random.normal(ky, (n, c, h2, w2), jnp.float32)

    raw_params = init_params(kp, c)

    out = scab_forward(x, y, raw_params)
    out = jax.block_until_ready(out)
    assert out.shape == (n, c, h, w)

    ref = jax.block_until_ready(scab_reference(x, y, raw_params))
    max_err = float(jnp.max(jnp.abs(out - ref)))
    if not (max_err < 2e-3):
        raise AssertionError(f"Pallas SCAB mismatch vs reference: max_err={max_err}")

    print("KERNEL_OK")
</pallas_src>

<mosaic_0001>
module attributes {stable_mosaic.version = 11 : i64} {
  func.func @scab_kernel(%arg0: memref<8x256xf32, #tpu.memory_space<vmem>>, %arg1: memref<8x64xf32, #tpu.memory_space<vmem>>, %arg2: memref<4x4xf32, #tpu.memory_space<vmem>>, %arg3: memref<4x8xf32, #tpu.memory_space<vmem>>, %arg4: memref<128x128xf32, #tpu.memory_space<vmem>>, %arg5: memref<1x128xf32, #tpu.memory_space<vmem>>, %arg6: memref<128x128xf32, #tpu.memory_space<vmem>>, %arg7: memref<1x128xf32, #tpu.memory_space<vmem>>, %arg8: memref<256x64xf32, #tpu.memory_space<vmem>>, %arg9: memref<64x256xf32, #tpu.memory_space<vmem>>, %arg10: memref<72x8xf32, #tpu.memory_space<vmem>>, %arg11: memref<9x64x256xf32, #tpu.memory_space<vmem>>, %arg12: memref<8x1xf32, #tpu.memory_space<vmem>>, %arg13: memref<8x2xf32, #tpu.memory_space<vmem>>, %arg14: memref<2x8xf32, #tpu.memory_space<vmem>>, %arg15: memref<8x4xf32, #tpu.memory_space<vmem>>, %arg16: memref<8x256xf32, #tpu.memory_space<vmem>>) attributes {dimension_semantics = [], scalar_prefetch = 0 : i64, scratch_operands = 0 : i64, tpu.core_type = #tpu.core_type<tc>} {
    %c0 = arith.constant 0 : index
    %c0_0 = arith.constant 0 : index
    %0 = vector.load %arg0[%c0, %c0_0] : memref<8x256xf32, #tpu.memory_space<vmem>>, vector<8x256xf32>
    %c0_1 = arith.constant 0 : index
    %c0_2 = arith.constant 0 : index
    %1 = vector.load %arg1[%c0_1, %c0_2] : memref<8x64xf32, #tpu.memory_space<vmem>>, vector<8x64xf32>
    %c0_3 = arith.constant 0 : index
    %c0_4 = arith.constant 0 : index
    %2 = vector.load %arg13[%c0_3, %c0_4] : memref<8x2xf32, #tpu.memory_space<vmem>>, vector<8x2xf32>
    %c0_5 = arith.constant 0 : index
    %c0_6 = arith.constant 0 : index
    %3 = vector.load %arg14[%c0_5, %c0_6] : memref<2x8xf32, #tpu.memory_space<vmem>>, vector<2x8xf32>
    %c0_7 = arith.constant 0 : index
    %c0_8 = arith.constant 0 : index
    %4 = vector.load %arg15[%c0_7, %c0_8] : memref<8x4xf32, #tpu.memory_space<vmem>>, vector<8x4xf32>
    %c0_9 = arith.constant 0 : index
    %c0_10 = arith.constant 0 : index
    %5 = vector.load %arg8[%c0_9, %c0_10] : memref<256x64xf32, #tpu.memory_space<vmem>>, vector<256x64xf32>
    %cst = arith.constant dense<0.000000e+00> : vector<8x64xf32>
    %6 = tpu.matmul %0, %5, %cst {dimension_numbers = #tpu.dot_dimension_numbers<[1], [0], [0], [1], [0, 0, 1, 1], [], []>} : vector<8x256xf32>, vector<256x64xf32>, vector<8x64xf32> -> vector<8x64xf32>
    %7 = arith.addf %6, %1 : vector<8x64xf32>
    %cst_11 = arith.constant dense<0.000000e+00> : vector<8xf32>
    %8 = vector.multi_reduction <add>, %7, %cst_11 [1] : vector<8x64xf32> to vector<8xf32>
    %9 = vector.shape_cast %8 : vector<8xf32> to vector<8x1xf32>
    %cst_12 = arith.constant 1.562500e-02 : f32
    %10 = vector.broadcast %cst_12 : f32 to vector<8x1xf32>
    %11 = arith.mulf %9, %10 : vector<8x1xf32>
    %12 = vector.broadcast %11 : vector<8x1xf32> to vector<8x4xf32>
    %13 = arith.mulf %12, %4 : vector<8x4xf32>
    %cst_13 = arith.constant dense<0.000000e+00> : vector<2x4xf32>
    %14 = tpu.matmul %3, %13, %cst_13 {dimension_numbers = #tpu.dot_dimension_numbers<[1], [0], [0], [1], [0, 0, 1, 1], [], []>} : vector<2x8xf32>, vector<8x4xf32>, vector<2x4xf32> -> vector<2x4xf32>
    %c0_14 = arith.constant 0 : index
    %c0_15 = arith.constant 0 : index
    %15 = vector.load %arg2[%c0_14, %c0_15] : memref<4x4xf32, #tpu.memory_space<vmem>>, vector<4x4xf32>
    %cst_16 = arith.constant dense<0.000000e+00> : vector<2x4xf32>
    %16 = tpu.matmul %14, %15, %cst_16 {dimension_numbers = #tpu.dot_dimension_numbers<[1], [0], [0], [1], [0, 0, 1, 1], [], []>} : vector<2x4xf32>, vector<4x4xf32>, vector<2x4xf32> -> vector<2x4xf32>
    %cst_17 = arith.constant 0.000000e+00 : f32
    %17 = vector.broadcast %cst_17 : f32 to vector<2x4xf32>
    %18 = arith.maximumf %16, %17 : vector<2x4xf32>
    %c0_18 = arith.constant 0 : index
    %c0_19 = arith.constant 0 : index
    %19 = vector.load %arg3[%c0_18, %c0_19] : memref<4x8xf32, #tpu.memory_space<vmem>>, vector<4x8xf32>
    %cst_20 = arith.constant dense<0.000000e+00> : vector<2x8xf32>
    %20 = tpu.matmul %18, %19, %cst_20 {dimension_numbers = #tpu.dot_dimension_numbers<[1], [0], [0], [1], [0, 0, 1, 1], [], []>} : vector<2x4xf32>, vector<4x8xf32>, vector<2x8xf32> -> vector<2x8xf32>
    %21 = vector.extract_strided_slice %20 {offsets = [0, 0], sizes = [2, 4], strides = [1, 1]} : vector<2x8xf32> to vector<2x4xf32>
    %22 = vector.extract_strided_slice %20 {offsets = [0, 4], sizes = [2, 4], strides = [1, 1]} : vector<2x8xf32> to vector<2x4xf32>
    %23 = arith.maximumf %21, %22 : vector<2x4xf32>
    %24 = arith.subf %21, %23 : vector<2x4xf32>
    %25 = math.exp %24 : vector<2x4xf32>
    %26 = arith.subf %22, %23 : vector<2x4xf32>
    %27 = math.exp %26 : vector<2x4xf32>
    %28 = arith.addf %25, %27 : vector<2x4xf32>
    %29 = arith.divf %25, %28 : vector<2x4xf32>
    %30 = arith.divf %27, %28 : vector<2x4xf32>
    %cst_21 = arith.constant dense<0.000000e+00> : vector<8x4xf32>
    %31 = tpu.matmul %2, %29, %cst_21 {dimension_numbers = #tpu.dot_dimension_numbers<[1], [0], [0], [1], [0, 0, 1, 1], [], []>} : vector<8x2xf32>, vector<2x4xf32>, vector<8x4xf32> -> vector<8x4xf32>
    %32 = arith.mulf %31, %4 : vector<8x4xf32>
    %cst_22 = arith.constant dense<0.000000e+00> : vector<8xf32>
    %33 = vector.multi_reduction <add>, %32, %cst_22 [1] : vector<8x4xf32> to vector<8xf32>
    %34 = vector.shape_cast %33 : vector<8xf32> to vector<8x1xf32>
    %cst_23 = arith.constant dense<0.000000e+00> : vector<8x4xf32>
    %35 = tpu.matmul %2, %30, %cst_23 {dimension_numbers = #tpu.dot_dimension_numbers<[1], [0], [0], [1], [0, 0, 1, 1], [], []>} : vector<8x2xf32>, vector<2x4xf32>, vector<8x4xf32> -> vector<8x4xf32>
    %36 = arith.mulf %35, %4 : vector<8x4xf32>
    %cst_24 = arith.constant dense<0.000000e+00> : vector<8xf32>
    %37 = vector.multi_reduction <add>, %36, %cst_24 [1] : vector<8x4xf32> to vector<8xf32>
    %38 = vector.shape_cast %37 : vector<8xf32> to vector<8x1xf32>
    %cst_25 = arith.constant dense<0.000000e+00> : vector<2x64xf32>
    %39 = tpu.matmul %3, %7, %cst_25 {dimension_numbers = #tpu.dot_dimension_numbers<[1], [0], [0], [1], [0, 0, 1, 1], [], []>} : vector<2x8xf32>, vector<8x64xf32>, vector<2x64xf32> -> vector<2x64xf32>
    %cst_26 = arith.constant 2.500000e-01 : f32
    %40 = vector.broadcast %cst_26 : f32 to vector<2x64xf32>
    %41 = arith.mulf %39, %40 : vector<2x64xf32>
    %42 = vector.extract_strided_slice %7 {offsets = [0, 0], sizes = [4, 64], strides = [1, 1]} : vector<8x64xf32> to vector<4x64xf32>
    %cst_27 = arith.constant dense<0xFF800000> : vector<64xf32>
    %43 = vector.multi_reduction <maximumf>, %42, %cst_27 [0] : vector<4x64xf32> to vector<64xf32>
    %44 = vector.shape_cast %43 : vector<64xf32> to vector<1x64xf32>
    %45 = vector.extract_strided_slice %7 {offsets = [4, 0], sizes = [4, 64], strides = [1, 1]} : vector<8x64xf32> to vector<4x64xf32>
    %cst_28 = arith.constant dense<0xFF800000> : vector<64xf32>
    %46 = vector.multi_reduction <maximumf>, %45, %cst_28 [0] : vector<4x64xf32> to vector<64xf32>
    %47 = vector.shape_cast %46 : vector<64xf32> to vector<1x64xf32>
    %48 = tpu.concatenate %44, %47 in 0 : vector<1x64xf32>, vector<1x64xf32> -> vector<2x64xf32>
    %49 = tpu.concatenate %48, %41 in 1 : vector<2x64xf32>, vector<2x64xf32> -> vector<2x128xf32>
    %c0_29 = arith.constant 0 : index
    %c0_30 = arith.constant 0 : index
    %50 = vector.load %arg4[%c0_29, %c0_30] : memref<128x128xf32, #tpu.memory_space<vmem>>, vector<128x128xf32>
    %cst_31 = arith.constant dense<0.000000e+00> : vector<2x128xf32>
    %51 = tpu.matmul %49, %50, %cst_31 {dimension_numbers = #tpu.dot_dimension_numbers<[1], [0], [0], [1], [0, 0, 1, 1], [], []>} : vector<2x128xf32>, vector<128x128xf32>, vector<2x128xf32> -> vector<2x128xf32>
    %c0_32 = arith.constant 0 : index
    %c0_33 = arith.constant 0 : index
    %52 = vector.load %arg5[%c0_32, %c0_33] : memref<1x128xf32, #tpu.memory_space<vmem>>, vector<1x128xf32>
    %53 = vector.broadcast %52 : vector<1x128xf32> to vector<2x128xf32>
    %54 = arith.addf %51, %53 : vector<2x128xf32>
    %cst_34 = arith.constant 0.000000e+00 : f32
    %55 = vector.broadcast %cst_34 : f32 to vector<2x128xf32>
    %56 = arith.maximumf %54, %55 : vector<2x128xf32>
    %c0_35 = arith.constant 0 : index
    %c0_36 = arith.constant 0 : index
    %57 = vector.load %arg6[%c0_35, %c0_36] : memref<128x128xf32, #tpu.memory_space<vmem>>, vector<128x128xf32>
    %cst_37 = arith.constant dense<0.000000e+00> : vector<2x128xf32>
    %58 = tpu.matmul %56, %57, %cst_37 {dimension_numbers = #tpu.dot_dimension_numbers<[1], [0], [0], [1], [0, 0, 1, 1], [], []>} : vector<2x128xf32>, vector<128x128xf32>, vector<2x128xf32> -> vector<2x128xf32>
    %c0_38 = arith.constant 0 : index
    %c0_39 = arith.constant 0 : index
    %59 = vector.load %arg7[%c0_38, %c0_39] : memref<1x128xf32, #tpu.memory_space<vmem>>, vector<1x128xf32>
    %60 = vector.broadcast %59 : vector<1x128xf32> to vector<2x128xf32>
    %61 = arith.addf %58, %60 : vector<2x128xf32>
    %62 = vector.extract_strided_slice %61 {offsets = [0, 0], sizes = [2, 64], strides = [1, 1]} : vector<2x128xf32> to vector<2x64xf32>
    %63 = vector.extract_strided_slice %61 {offsets = [0, 64], sizes = [2, 64], strides = [1, 1]} : vector<2x128xf32> to vector<2x64xf32>
    %64 = arith.maximumf %62, %63 : vector<2x64xf32>
    %65 = arith.subf %62, %64 : vector<2x64xf32>
    %66 = math.exp %65 : vector<2x64xf32>
    %67 = arith.subf %63, %64 : vector<2x64xf32>
    %68 = math.exp %67 : vector<2x64xf32>
    %69 = arith.addf %66, %68 : vector<2x64xf32>
    %70 = arith.divf %66, %69 : vector<2x64xf32>
    %71 = arith.divf %68, %69 : vector<2x64xf32>
    %c0_40 = arith.constant 0 : index
    %c0_41 = arith.constant 0 : index
    %72 = vector.load %arg9[%c0_40, %c0_41] : memref<64x256xf32, #tpu.memory_space<vmem>>, vector<64x256xf32>
    %cst_42 = arith.constant dense<0.000000e+00> : vector<2x256xf32>
    %73 = tpu.matmul %70, %72, %cst_42 {dimension_numbers = #tpu.dot_dimension_numbers<[1], [0], [0], [1], [0, 0, 1, 1], [], []>} : vector<2x64xf32>, vector<64x256xf32>, vector<2x256xf32> -> vector<2x256xf32>
    %cst_43 = arith.constant dense<0.000000e+00> : vector<8x256xf32>
    %74 = tpu.matmul %2, %73, %cst_43 {dimension_numbers = #tpu.dot_dimension_numbers<[1], [0], [0], [1], [0, 0, 1, 1], [], []>} : vector<8x2xf32>, vector<2x256xf32>, vector<8x256xf32> -> vector<8x256xf32>
    %75 = vector.broadcast %34 : vector<8x1xf32> to vector<8x256xf32>
    %76 = arith.addf %75, %74 : vector<8x256xf32>
    %77 = arith.mulf %0, %76 : vector<8x256xf32>
    %cst_44 = arith.constant dense<0.000000e+00> : vector<8x64xf32>
    %78 = tpu.matmul %2, %71, %cst_44 {dimension_numbers = #tpu.dot_dimension_numbers<[1], [0], [0], [1], [0, 0, 1, 1], [], []>} : vector<8x2xf32>, vector<2x64xf32>, vector<8x64xf32> -> vector<8x64xf32>
    %79 = vector.broadcast %38 : vector<8x1xf32> to vector<8x64xf32>
    %80 = arith.addf %79, %78 : vector<8x64xf32>
    %81 = arith.mulf %1, %80 : vector<8x64xf32>
    %c0_45 = arith.constant 0 : index
    %c0_46 = arith.constant 0 : index
    %82 = vector.load %arg10[%c0_45, %c0_46] : memref<72x8xf32, #tpu.memory_space<vmem>>, vector<72x8xf32>
    %cst_47 = arith.constant dense<0.000000e+00> : vector<72x64xf32>
    %83 = tpu.matmul %82, %81, %cst_47 {dimension_numbers = #tpu.dot_dimension_numbers<[1], [0], [0], [1], [0, 0, 1, 1], [], []>} : vector<72x8xf32>, vector<8x64xf32>, vector<72x64xf32> -> vector<72x64xf32>
    %84 = vector.extract_strided_slice %83 {offsets = [0, 0], sizes = [8, 64], strides = [1, 1]} : vector<72x64xf32> to vector<8x64xf32>
    %c0_48 = arith.constant 0 : index
    %c0_49 = arith.constant 0 : index
    %c0_50 = arith.constant 0 : index
    %85 = vector.load %arg11[%c0_48, %c0_49, %c0_50] : memref<9x64x256xf32, #tpu.memory_space<vmem>>, vector<1x64x256xf32>
    %86 = vector.shape_cast %85 : vector<1x64x256xf32> to vector<64x256xf32>
    %cst_51 = arith.constant dense<0.000000e+00> : vector<8x256xf32>
    %87 = tpu.matmul %84, %86, %cst_51 {dimension_numbers = #tpu.dot_dimension_numbers<[1], [0], [0], [1], [0, 0, 1, 1], [], []>} : vector<8x64xf32>, vector<64x256xf32>, vector<8x256xf32> -> vector<8x256xf32>
    %88 = vector.extract_strided_slice %83 {offsets = [8, 0], sizes = [8, 64], strides = [1, 1]} : vector<72x64xf32> to vector<8x64xf32>
    %c1 = arith.constant 1 : index
    %c0_52 = arith.constant 0 : index
    %c0_53 = arith.constant 0 : index
    %89 = vector.load %arg11[%c1, %c0_52, %c0_53] : memref<9x64x256xf32, #tpu.memory_space<vmem>>, vector<1x64x256xf32>
    %90 = vector.shape_cast %89 : vector<1x64x256xf32> to vector<64x256xf32>
    %cst_54 = arith.constant dense<0.000000e+00> : vector<8x256xf32>
    %91 = tpu.matmul %88, %90, %cst_54 {dimension_numbers = #tpu.dot_dimension_numbers<[1], [0], [0], [1], [0, 0, 1, 1], [], []>} : vector<8x64xf32>, vector<64x256xf32>, vector<8x256xf32> -> vector<8x256xf32>
    %92 = arith.addf %87, %91 : vector<8x256xf32>
    %93 = vector.extract_strided_slice %83 {offsets = [16, 0], sizes = [8, 64], strides = [1, 1]} : vector<72x64xf32> to vector<8x64xf32>
    %c2 = arith.constant 2 : index
    %c0_55 = arith.constant 0 : index
    %c0_56 = arith.constant 0 : index
    %94 = vector.load %arg11[%c2, %c0_55, %c0_56] : memref<9x64x256xf32, #tpu.memory_space<vmem>>, vector<1x64x256xf32>
    %95 = vector.shape_cast %94 : vector<1x64x256xf32> to vector<64x256xf32>
    %cst_57 = arith.constant dense<0.000000e+00> : vector<8x256xf32>
    %96 = tpu.matmul %93, %95, %cst_57 {dimension_numbers = #tpu.dot_dimension_numbers<[1], [0], [0], [1], [0, 0, 1, 1], [], []>} : vector<8x64xf32>, vector<64x256xf32>, vector<8x256xf32> -> vector<8x256xf32>
    %97 = arith.addf %92, %96 : vector<8x256xf32>
    %98 = vector.extract_strided_slice %83 {offsets = [24, 0], sizes = [8, 64], strides = [1, 1]} : vector<72x64xf32> to vector<8x64xf32>
    %c3 = arith.constant 3 : index
    %c0_58 = arith.constant 0 : index
    %c0_59 = arith.constant 0 : index
    %99 = vector.load %arg11[%c3, %c0_58, %c0_59] : memref<9x64x256xf32, #tpu.memory_space<vmem>>, vector<1x64x256xf32>
    %100 = vector.shape_cast %99 : vector<1x64x256xf32> to vector<64x256xf32>
    %cst_60 = arith.constant dense<0.000000e+00> : vector<8x256xf32>
    %101 = tpu.matmul %98, %100, %cst_60 {dimension_numbers = #tpu.dot_dimension_numbers<[1], [0], [0], [1], [0, 0, 1, 1], [], []>} : vector<8x64xf32>, vector<64x256xf32>, vector<8x256xf32> -> vector<8x256xf32>
    %102 = arith.addf %97, %101 : vector<8x256xf32>
    %103 = vector.extract_strided_slice %83 {offsets = [32, 0], sizes = [8, 64], strides = [1, 1]} : vector<72x64xf32> to vector<8x64xf32>
    %c4 = arith.constant 4 : index
    %c0_61 = arith.constant 0 : index
    %c0_62 = arith.constant 0 : index
    %104 = vector.load %arg11[%c4, %c0_61, %c0_62] : memref<9x64x256xf32, #tpu.memory_space<vmem>>, vector<1x64x256xf32>
    %105 = vector.shape_cast %104 : vector<1x64x256xf32> to vector<64x256xf32>
    %cst_63 = arith.constant dense<0.000000e+00> : vector<8x256xf32>
    %106 = tpu.matmul %103, %105, %cst_63 {dimension_numbers = #tpu.dot_dimension_numbers<[1], [0], [0], [1], [0, 0, 1, 1], [], []>} : vector<8x64xf32>, vector<64x256xf32>, vector<8x256xf32> -> vector<8x256xf32>
    %107 = arith.addf %102, %106 : vector<8x256xf32>
    %108 = vector.extract_strided_slice %83 {offsets = [40, 0], sizes = [8, 64], strides = [1, 1]} : vector<72x64xf32> to vector<8x64xf32>
    %c5 = arith.constant 5 : index
    %c0_64 = arith.constant 0 : index
    %c0_65 = arith.constant 0 : index
    %109 = vector.load %arg11[%c5, %c0_64, %c0_65] : memref<9x64x256xf32, #tpu.memory_space<vmem>>, vector<1x64x256xf32>
    %110 = vector.shape_cast %109 : vector<1x64x256xf32> to vector<64x256xf32>
    %cst_66 = arith.constant dense<0.000000e+00> : vector<8x256xf32>
    %111 = tpu.matmul %108, %110, %cst_66 {dimension_numbers = #tpu.dot_dimension_numbers<[1], [0], [0], [1], [0, 0, 1, 1], [], []>} : vector<8x64xf32>, vector<64x256xf32>, vector<8x256xf32> -> vector<8x256xf32>
    %112 = arith.addf %107, %111 : vector<8x256xf32>
    %113 = vector.extract_strided_slice %83 {offsets = [48, 0], sizes = [8, 64], strides = [1, 1]} : vector<72x64xf32> to vector<8x64xf32>
    %c6 = arith.constant 6 : index
    %c0_67 = arith.constant 0 : index
    %c0_68 = arith.constant 0 : index
    %114 = vector.load %arg11[%c6, %c0_67, %c0_68] : memref<9x64x256xf32, #tpu.memory_space<vmem>>, vector<1x64x256xf32>
    %115 = vector.shape_cast %114 : vector<1x64x256xf32> to vector<64x256xf32>
    %cst_69 = arith.constant dense<0.000000e+00> : vector<8x256xf32>
    %116 = tpu.matmul %113, %115, %cst_69 {dimension_numbers = #tpu.dot_dimension_numbers<[1], [0], [0], [1], [0, 0, 1, 1], [], []>} : vector<8x64xf32>, vector<64x256xf32>, vector<8x256xf32> -> vector<8x256xf32>
    %117 = arith.addf %112, %116 : vector<8x256xf32>
    %118 = vector.extract_strided_slice %83 {offsets = [56, 0], sizes = [8, 64], strides = [1, 1]} : vector<72x64xf32> to vector<8x64xf32>
    %c7 = arith.constant 7 : index
    %c0_70 = arith.constant 0 : index
    %c0_71 = arith.constant 0 : index
    %119 = vector.load %arg11[%c7, %c0_70, %c0_71] : memref<9x64x256xf32, #tpu.memory_space<vmem>>, vector<1x64x256xf32>
    %120 = vector.shape_cast %119 : vector<1x64x256xf32> to vector<64x256xf32>
    %cst_72 = arith.constant dense<0.000000e+00> : vector<8x256xf32>
    %121 = tpu.matmul %118, %120, %cst_72 {dimension_numbers = #tpu.dot_dimension_numbers<[1], [0], [0], [1], [0, 0, 1, 1], [], []>} : vector<8x64xf32>, vector<64x256xf32>, vector<8x256xf32> -> vector<8x256xf32>
    %122 = arith.addf %117, %121 : vector<8x256xf32>
    %123 = vector.extract_strided_slice %83 {offsets = [64, 0], sizes = [8, 64], strides = [1, 1]} : vector<72x64xf32> to vector<8x64xf32>
    %c8 = arith.constant 8 : index
    %c0_73 = arith.constant 0 : index
    %c0_74 = arith.constant 0 : index
    %124 = vector.load %arg11[%c8, %c0_73, %c0_74] : memref<9x64x256xf32, #tpu.memory_space<vmem>>, vector<1x64x256xf32>
    %125 = vector.shape_cast %124 : vector<1x64x256xf32> to vector<64x256xf32>
    %cst_75 = arith.constant dense<0.000000e+00> : vector<8x256xf32>
    %126 = tpu.matmul %123, %125, %cst_75 {dimension_numbers = #tpu.dot_dimension_numbers<[1], [0], [0], [1], [0, 0, 1, 1], [], []>} : vector<8x64xf32>, vector<64x256xf32>, vector<8x256xf32> -> vector<8x256xf32>
    %127 = arith.addf %122, %126 : vector<8x256xf32>
    %c0_76 = arith.constant 0 : index
    %c0_77 = arith.constant 0 : index
    %128 = vector.load %arg12[%c0_76, %c0_77] : memref<8x1xf32, #tpu.memory_space<vmem>>, vector<8x1xf32>
    %129 = vector.broadcast %128 : vector<8x1xf32> to vector<8x256xf32>
    %130 = arith.addf %127, %129 : vector<8x256xf32>
    %131 = arith.addf %77, %130 : vector<8x256xf32>
    %c0_78 = arith.constant 0 : index
    %c0_79 = arith.constant 0 : index
    %132 = vector.load %arg16[%c0_78, %c0_79] : memref<8x256xf32, #tpu.memory_space<vmem>>, vector<8x256xf32>
    tpu.vector_store %arg16[%c0_78, %c0_79], %131 {strides = array<i32>} : memref<8x256xf32, #tpu.memory_space<vmem>>, vector<8x256xf32>,
    return
  }
}

</mosaic_0001>

<llo_original>
// kernel: tile.8
$region0: #{tile.8}
  #allocation0 [shape = 's32[1]{0}', space=sflag, size = 0x4, scoped, tag = 'scoped memory for tile.8']
  %s0 = inlined_call_operand.vmem [shape: f32[4], index: 0, kind: input, shape index: {}]
  %s1 = inlined_call_operand.vmem [shape: f32[2,4], index: 1, kind: output, shape index: {}]
  // Predicated region
  $region2: #{tile.8} parent=0 // pred_check
    _
  $region3: #{tile.8} parent=0 // pred_check_branch
    %3 = sbr.rel (0) target = $region5
  $region4: #{tile.8} parent=0 // pred_region
    _
  $region5: #{tile.8} parent=0 // pred_fallthru
    _
  %v4 = vld [vmem:[%s0] ss:$0 sm:$0xff]
  %5 = vst [vmem:[%s1] sm:$0x3] %v4

// kernel: tile.0
$region0: #{tile.0}
  %s0 = inlined_call_operand.vmem [shape: f32[2,4], index: 0, kind: input, shape index: {}]
  %s1 = inlined_call_operand.vmem [shape: f32[8,1], index: 1, kind: output, shape index: {}]
  $region1: #{tile.0} parent=0
    #allocation0 [shape = 'u8[4096]{0}', space=vmem, size = 0x1000, scoped, tag = 'scoped mem for input reshape']
    %s3 = ssub.s32 4, 1
    %v4 = vld [vmem:[%s0] sm:%s3]
    %5 = vst [vmem:[#allocation0] sm:%s3] %v4
    %v6 = vld [vmem:[#allocation0] sm:$0x3]
    %vm7 = vcmask 7168
    %8 = vst.msk [vmem:[%s1] ss:$4 sm:$0x3] %vm7, %v6
    %v9 = vld [vmem:[#allocation0] sm:$0x3]
    %10 = vrot.lane.b32.xlu0 %v9, 127
    %v11 = vpop.permute.xlu0 %10
    %vm12 = vcmask 7168
    %s13 = scalar_lea.vmem %s1, 1
    %14 = vst.msk [vmem:[%s13] ss:$4 sm:$0x3] %vm12, %v11
    %v15 = vld [vmem:[#allocation0] sm:$0x3]
    %16 = vrot.lane.b32.xlu0 %v15, 126
    %v17 = vpop.permute.xlu0 %16
    %vm18 = vcmask 7168
    %s19 = scalar_lea.vmem %s1, 2
    %20 = vst.msk [vmem:[%s19] ss:$4 sm:$0x3] %vm18, %v17
    %v21 = vld [vmem:[#allocation0] sm:$0x3]
    %22 = vrot.lane.b32.xlu0 %v21, 125
    %v23 = vpop.permute.xlu0 %22
    %vm24 = vcmask 7168
    %s25 = scalar_lea.vmem %s1, 3
    %26 = vst.msk [vmem:[%s25] ss:$4 sm:$0x3] %vm24, %v23

// kernel: scab_forward.1
$region0: #{scab_forward.1}
  #allocation0 [shape = 'u32[]', space=smem, size = 0x4, offset = 0x4, fixed_abs, tag = 'smem constant byte address 0x4 - core index']
  #allocation1 [shape = 'u32[72,128]{1,0:T(1,128)}', space=vmem, size = 0x9000, scoped, tag = 'internal scratch']
  %s0 = inlined_call_operand.vmem [shape: f32[8,256], index: 0, kind: input, shape index: {}]
  %s1 = inlined_call_operand.vmem [shape: f32[8,64], index: 1, kind: input, shape index: {}]
  %s2 = inlined_call_operand.vmem [shape: f32[4,4], index: 2, kind: input, shape index: {}]
  %s3 = inlined_call_operand.vmem [shape: f32[4,8], index: 3, kind: input, shape index: {}]
  %s4 = inlined_call_operand.vmem [shape: f32[128,128], index: 4, kind: input, shape index: {}]
  %s5 = inlined_call_operand.vmem [shape: f32[1,128], index: 5, kind: input, shape index: {}]
  %s6 = inlined_call_operand.vmem [shape: f32[128,128], index: 6, kind: input, shape index: {}]
  %s7 = inlined_call_operand.vmem [shape: f32[1,128], index: 7, kind: input, shape index: {}]
  %s8 = inlined_call_operand.vmem [shape: f32[256,64], index: 8, kind: input, shape index: {}]
  %s9 = inlined_call_operand.vmem [shape: f32[64,256], index: 9, kind: input, shape index: {}]
  %s10 = inlined_call_operand.vmem [shape: f32[72,8], index: 10, kind: input, shape index: {}]
  %s11 = inlined_call_operand.vmem [shape: f32[9,64,256], index: 11, kind: input, shape index: {}]
  %s12 = inlined_call_operand.vmem [shape: f32[8,1], index: 12, kind: input, shape index: {}]
  %s13 = inlined_call_operand.vmem [shape: f32[8,2], index: 13, kind: input, shape index: {}]
  %s14 = inlined_call_operand.vmem [shape: f32[2,8], index: 14, kind: input, shape index: {}]
  %s15 = inlined_call_operand.vmem [shape: f32[8,4], index: 15, kind: input, shape index: {}]
  %s16 = inlined_call_operand.vmem [shape: f32[8,256], index: 16, kind: output, shape index: {}]
  %s17 = sld [smem:[#allocation0]]
  $region74: #{scab_forward.1} parent=0
    _
  %s19 = ssub.s32 1, %s17
  %s20 = scalar_select 0, %s19, %s17
  // Predicated region
  $region2: #{scab_forward.1} parent=0 // pred_check
    _
  $region3: #{scab_forward.1} parent=0 // pred_check_branch
    %22 = sbr.rel (0) target = $region5
  $region4: #{scab_forward.1} parent=0 // pred_region
    _
  $region5: #{scab_forward.1} parent=0 // pred_fallthru
    _
  // Predicated region
  $region6: #{scab_forward.1} parent=0 // pred_check
    _
  $region7: #{scab_forward.1} parent=0 // pred_check_branch
    %24 = sbr.rel (0) target = $region9
  $region8: #{scab_forward.1} parent=0 // pred_region
    _
  $region9: #{scab_forward.1} parent=0 // pred_fallthru
    _
  // Predicated region
  $region10: #{scab_forward.1} parent=0 // pred_check
    _
  $region11: #{scab_forward.1} parent=0 // pred_check_branch
    %26 = sbr.rel (0) target = $region13
  $region12: #{scab_forward.1} parent=0 // pred_region
    _
  $region13: #{scab_forward.1} parent=0 // pred_fallthru
    _
  // Predicated region
  $region14: #{scab_forward.1} parent=0 // pred_check
    _
  $region15: #{scab_forward.1} parent=0 // pred_check_branch
    %28 = sbr.rel (0) target = $region17
  $region16: #{scab_forward.1} parent=0 // pred_region
    _
  $region17: #{scab_forward.1} parent=0 // pred_fallthru
    _
  // Predicated region
  $region18: #{scab_forward.1} parent=0 // pred_check
    _
  $region19: #{scab_forward.1} parent=0 // pred_check_branch
    %30 = sbr.rel (0) target = $region21
  $region20: #{scab_forward.1} parent=0 // pred_region
    _
  $region21: #{scab_forward.1} parent=0 // pred_fallthru
    _
  // Predicated region
  $region22: #{scab_forward.1} parent=0 // pred_check
    _
  $region23: #{scab_forward.1} parent=0 // pred_check_branch
    %32 = sbr.rel (0) target = $region25
  $region24: #{scab_forward.1} parent=0 // pred_region
    _
  $region25: #{scab_forward.1} parent=0 // pred_fallthru
    _
  // Predicated region
  $region26: #{scab_forward.1} parent=0 // pred_check
    _
  $region27: #{scab_forward.1} parent=0 // pred_check_branch
    %34 = sbr.rel (0) target = $region29
  $region28: #{scab_forward.1} parent=0 // pred_region
    _
  $region29: #{scab_forward.1} parent=0 // pred_fallthru
    _
  // Predicated region
  $region30: #{scab_forward.1} parent=0 // pred_check
    _
  $region31: #{scab_forward.1} parent=0 // pred_check_branch
    %36 = sbr.rel (0) target = $region33
  $region32: #{scab_forward.1} parent=0 // pred_region
    _
  $region33: #{scab_forward.1} parent=0 // pred_fallthru
    _
  // Predicated region
  $region34: #{scab_forward.1} parent=0 // pred_check
    _
  $region35: #{scab_forward.1} parent=0 // pred_check_branch
    %38 = sbr.rel (0) target = $region37
  $region36: #{scab_forward.1} parent=0 // pred_region
    _
  $region37: #{scab_forward.1} parent=0 // pred_fallthru
    _
  // Predicated region
  $region38: #{scab_forward.1} parent=0 // pred_check
    _
  $region39: #{scab_forward.1} parent=0 // pred_check_branch
    %40 = sbr.rel (0) target = $region41
  $region40: #{scab_forward.1} parent=0 // pred_region
    _
  $region41: #{scab_forward.1} parent=0 // pred_fallthru
    _
  // Predicated region
  $region42: #{scab_forward.1} parent=0 // pred_check
    _
  $region43: #{scab_forward.1} parent=0 // pred_check_branch
    %42 = sbr.rel (0) target = $region45
  $region44: #{scab_forward.1} parent=0 // pred_region
    _
  $region45: #{scab_forward.1} parent=0 // pred_fallthru
    _
  // Predicated region
  $region46: #{scab_forward.1} parent=0 // pred_check
    _
  $region47: #{scab_forward.1} parent=0 // pred_check_branch
    %44 = sbr.rel (0) target = $region49
  $region48: #{scab_forward.1} parent=0 // pred_region
    _
  $region49: #{scab_forward.1} parent=0 // pred_fallthru
    _
  // Predicated region
  $region50: #{scab_forward.1} parent=0 // pred_check
    _
  $region51: #{scab_forward.1} parent=0 // pred_check_branch
    %46 = sbr.rel (0) target = $region53
  $region52: #{scab_forward.1} parent=0 // pred_region
    _
  $region53: #{scab_forward.1} parent=0 // pred_fallthru
    _
  // Predicated region
  $region54: #{scab_forward.1} parent=0 // pred_check
    _
  $region55: #{scab_forward.1} parent=0 // pred_check_branch
    %48 = sbr.rel (0) target = $region57
  $region56: #{scab_forward.1} parent=0 // pred_region
    _
  $region57: #{scab_forward.1} parent=0 // pred_fallthru
    _
  // Predicated region
  $region58: #{scab_forward.1} parent=0 // pred_check
    _
  $region59: #{scab_forward.1} parent=0 // pred_check_branch
    %50 = sbr.rel (0) target = $region61
  $region60: #{scab_forward.1} parent=0 // pred_region
    _
  $region61: #{scab_forward.1} parent=0 // pred_fallthru
    _
  // Predicated region
  $region62: #{scab_forward.1} parent=0 // pred_check
    _
  $region63: #{scab_forward.1} parent=0 // pred_check_branch
    %52 = sbr.rel (0) target = $region65
  $region64: #{scab_forward.1} parent=0 // pred_region
    _
  $region65: #{scab_forward.1} parent=0 // pred_fallthru
    _
  %v53 = vld [vmem:[%s0] sm:$0xff]
  %v54 = vld [vmem:[%s0 + $0x8] sm:$0xff]
  %v55 = vld [vmem:[%s1] sm:$0xff]
  %v56 = vld [vmem:[%s13] sm:$0xff]
  %v57 = vld [vmem:[%s14] sm:$0x3]
  %v58 = vld [vmem:[%s15] sm:$0xff]
  %v59 = vld [vmem:[%s8] sm:$0xff]
  %v60 = vld [vmem:[%s8 + $0x8] sm:$0xff]
  %v61 = vld [vmem:[%s8 + $0x10] sm:$0xff]
  %v62 = vld [vmem:[%s8 + $0x18] sm:$0xff]
  %v63 = vld [vmem:[%s8 + $0x20] sm:$0xff]
  %v64 = vld [vmem:[%s8 + $0x28] sm:$0xff]
  %v65 = vld [vmem:[%s8 + $0x30] sm:$0xff]
  %v66 = vld [vmem:[%s8 + $0x38] sm:$0xff]
  %v67 = vld [vmem:[%s8 + $0x40] sm:$0xff]
  %v68 = vld [vmem:[%s8 + $0x48] sm:$0xff]
  %v69 = vld [vmem:[%s8 + $0x50] sm:$0xff]
  %v70 = vld [vmem:[%s8 + $0x58] sm:$0xff]
  %v71 = vld [vmem:[%s8 + $0x60] sm:$0xff]
  %v72 = vld [vmem:[%s8 + $0x68] sm:$0xff]
  %v73 = vld [vmem:[%s8 + $0x70] sm:$0xff]
  %v74 = vld [vmem:[%s8 + $0x78] sm:$0xff]
  %v75 = vld [vmem:[%s8 + $0x80] sm:$0xff]
  %v76 = vld [vmem:[%s8 + $0x88] sm:$0xff]
  %v77 = vld [vmem:[%s8 + $0x90] sm:$0xff]
  %v78 = vld [vmem:[%s8 + $0x98] sm:$0xff]
  %v79 = vld [vmem:[%s8 + $0xa0] sm:$0xff]
  %v80 = vld [vmem:[%s8 + $0xa8] sm:$0xff]
  %v81 = vld [vmem:[%s8 + $0xb0] sm:$0xff]
  %v82 = vld [vmem:[%s8 + $0xb8] sm:$0xff]
  %v83 = vld [vmem:[%s8 + $0xc0] sm:$0xff]
  %v84 = vld [vmem:[%s8 + $0xc8] sm:$0xff]
  %v85 = vld [vmem:[%s8 + $0xd0] sm:$0xff]
  %v86 = vld [vmem:[%s8 + $0xd8] sm:$0xff]
  %v87 = vld [vmem:[%s8 + $0xe0] sm:$0xff]
  %v88 = vld [vmem:[%s8 + $0xe8] sm:$0xff]
  %v89 = vld [vmem:[%s8 + $0xf0] sm:$0xff]
  %v90 = vld [vmem:[%s8 + $0xf8] sm:$0xff]
  %91 = vmatpush.msra.mxu0 %v74
  %92 = vmatpush.msra.mxu0 %v73
  %93 = vmatpush.msra.mxu0 %v72
  %94 = vmatpush.msra.mxu0 %v71
  %95 = vmatpush.msra.mxu0 %v70
  %96 = vmatpush.msra.mxu0 %v69
  %97 = vmatpush.msra.mxu0 %v68
  %98 = vmatpush.msra.mxu0 %v67
  %99 = vmatpush.msra.mxu0 %v66
  %100 = vmatpush.msra.mxu0 %v65
  %101 = vmatpush.msra.mxu0 %v64
  %102 = vmatpush.msra.mxu0 %v63
  %103 = vmatpush.msra.mxu0 %v62
  %104 = vmatpush.msra.mxu0 %v61
  %105 = vmatpush.msra.mxu0 %v60
  %106 = vmatpush.msra.mxu0 %v59
  %107 = vmatmul.f32.gmra.mxu0 %v53
  %v108 = vpop.f32.mrf.mxu0
  %v109 = vadd.f32 %v55, %v108
  %110 = vdwg.mxu0
  %111 = vmatpush.msra.mxu0 %v90
  %112 = vmatpush.msra.mxu0 %v89
  %113 = vmatpush.msra.mxu0 %v88
  %114 = vmatpush.msra.mxu0 %v87
  %115 = vmatpush.msra.mxu0 %v86
  %116 = vmatpush.msra.mxu0 %v85
  %117 = vmatpush.msra.mxu0 %v84
  %118 = vmatpush.msra.mxu0 %v83
  %119 = vmatpush.msra.mxu0 %v82
  %120 = vmatpush.msra.mxu0 %v81
  %121 = vmatpush.msra.mxu0 %v80
  %122 = vmatpush.msra.mxu0 %v79
  %123 = vmatpush.msra.mxu0 %v78
  %124 = vmatpush.msra.mxu0 %v77
  %125 = vmatpush.msra.mxu0 %v76
  %126 = vmatpush.msra.mxu0 %v75
  %127 = vmatmul.f32.gmra.mxu0 %v54
  %v128 = vpop.f32.mrf.mxu0
  %v129 = vadd.f32 %v109, %v128
  %130 = vdwg.mxu0
  %vm131 = vcmask 523264
  %v132 = vsel %vm131, %v129, 0.0
  %133 = vadd.xlane.f32.xlu0 %v132
  %v134 = vpop.xlane.xlu0 %133
  %v135 = vmul.f32 %v134, 0.015625
  %v136 = vmul.f32 %v135, %v58
  %vm137 = vcmask 64512
  %v139 = vsel %vm137, %v57, 0
  %141 = vmatpush.msra.mxu0 0.0
  %142 = vmatpush.msra.mxu0 0.0
  %143 = vmatpush.msra.mxu0 0.0
  %144 = vmatpush.msra.mxu0 0.0
  %145 = vmatpush.msra.mxu0 0.0
  %146 = vmatpush.msra.mxu0 0.0
  %147 = vmatpush.msra.mxu0 0.0
  %148 = vmatpush.msra.mxu0 0.0
  %149 = vmatpush.msra.mxu0 0.0
  %150 = vmatpush.msra.mxu0 0.0
  %151 = vmatpush.msra.mxu0 0.0
  %152 = vmatpush.msra.mxu0 0.0
  %153 = vmatpush.msra.mxu0 0.0
  %154 = vmatpush.msra.mxu0 0.0
  %155 = vmatpush.msra.mxu0 0.0
  %156 = vmatpush.msra.mxu0 %v136
  %157 = vmatmul.f32.gmra.mxu0 %v139
  %v158 = vpop.f32.mrf.mxu0
  %v159 = vadd.f32 0.0, %v158
  %160 = vdwg.mxu0
  %v161 = vld [vmem:[%s2] sm:$0xf]
  %vm162 = vcmask 31744
  %v164 = vsel %vm162, %v159, 0
  %vm166 = vcmask 1043456
  %v168 = vsel %vm166, %v161, 0
  %170 = vmatpush.msra.mxu0 0.0
  %171 = vmatpush.msra.mxu0 0.0
  %172 = vmatpush.msra.mxu0 0.0
  %173 = vmatpush.msra.mxu0 0.0
  %174 = vmatpush.msra.mxu0 0.0
  %175 = vmatpush.msra.mxu0 0.0
  %176 = vmatpush.msra.mxu0 0.0
  %177 = vmatpush.msra.mxu0 0.0
  %178 = vmatpush.msra.mxu0 0.0
  %179 = vmatpush.msra.mxu0 0.0
  %180 = vmatpush.msra.mxu0 0.0
  %181 = vmatpush.msra.mxu0 0.0
  %182 = vmatpush.msra.mxu0 0.0
  %183 = vmatpush.msra.mxu0 0.0
  %184 = vmatpush.msra.mxu0 0.0
  %185 = vmatpush.msra.mxu0 %v168
  %186 = vmatmul.f32.gmra.mxu0 %v164
  %v187 = vpop.f32.mrf.mxu0
  %v188 = vadd.f32 0.0, %v187
  %189 = vdwg.mxu0
  %v190 = vmax.f32 %v188, 0.0
  %v191 = vld [vmem:[%s3] sm:$0xf]
  %v193 = vsel %vm162, %v190, 0
  %v196 = vsel %vm166, %v191, 0
  %198 = vmatpush.msra.mxu0 0.0
  %199 = vmatpush.msra.mxu0 0.0
  %200 = vmatpush.msra.mxu0 0.0
  %201 = vmatpush.msra.mxu0 0.0
  %202 = vmatpush.msra.mxu0 0.0
  %203 = vmatpush.msra.mxu0 0.0
  %204 = vmatpush.msra.mxu0 0.0
  %205 = vmatpush.msra.mxu0 0.0
  %206 = vmatpush.msra.mxu0 0.0
  %207 = vmatpush.msra.mxu0 0.0
  %208 = vmatpush.msra.mxu0 0.0
  %209 = vmatpush.msra.mxu0 0.0
  %210 = vmatpush.msra.mxu0 0.0
  %211 = vmatpush.msra.mxu0 0.0
  %212 = vmatpush.msra.mxu0 0.0
  %213 = vmatpush.msra.mxu0 %v196
  %214 = vmatmul.f32.gmra.mxu0 %v193
  %v215 = vpop.f32.mrf.mxu0
  %v216 = vadd.f32 0.0, %v215
  %217 = vdwg.mxu0
  %219 = vrot.lane.b32.xlu0 %v216, 124
  %v220 = vpop.permute.xlu0 %219
  %v222 = vmax.f32 %v216, %v220
  %v223 = vsub.f32 %v216, %v222
  %v224 = vmul.f32 %v223, 1.442695
  %v225 = vpow.pop %v224
  %227 = vrot.lane.b32.xlu0 %v222, 4
  %v228 = vpop.permute.xlu0 %227
  %v230 = vsub.f32 %v216, %v228
  %v231 = vmul.f32 %v230, 1.442695
  %v232 = vpow.pop %v231
  %234 = vrot.lane.b32.xlu0 %v232, 124
  %v235 = vpop.permute.xlu0 %234
  %v237 = vadd.f32 %v225, %v235
  %v238 = vrcp.pop %v237
  %v239 = vmul.f32 %v237, %v238
  %v240 = vsub.f32 1.0, %v239
  %v241 = vmul.f32 %v238, %v240
  %v242 = vadd.f32 %v238, %v241
  %vm243 = vweird.f32 %v237
  %vm244 = vweird.f32 %v238
  %vm245 = vmor %vm243, %vm244
  %v246 = vsel %vm245, %v238, %v242
  %v247 = vand.u32 2147483647, %v237
  %vm248 = vcmp.eq.f32.partialorder %v247, 8.507059e+37
  %v249 = vand.u32 %v237, 2147483648
  %v250 = vor.u32 1.1754944e-38, %v249
  %v251 = vsel %vm248, %v250, %v246
  %v252 = vmul.f32 %v225, %v251
  %254 = vrot.lane.b32.xlu0 %v237, 4
  %v255 = vpop.permute.xlu0 %254
  %v257 = vrcp.pop %v255
  %v258 = vmul.f32 %v255, %v257
  %v259 = vsub.f32 1.0, %v258
  %v260 = vmul.f32 %v257, %v259
  %v261 = vadd.f32 %v257, %v260
  %vm262 = vweird.f32 %v255
  %vm263 = vweird.f32 %v257
  %vm264 = vmor %vm262, %vm263
  %v265 = vsel %vm264, %v257, %v261
  %v266 = vand.u32 2147483647, %v255
  %vm267 = vcmp.eq.f32.partialorder %v266, 8.507059e+37
  %v268 = vand.u32 %v255, 2147483648
  %v269 = vor.u32 1.1754944e-38, %v268
  %v270 = vsel %vm267, %v269, %v265
  %v271 = vmul.f32 %v232, %v270
  %vm272 = vcmask 15360
  %v274 = vsel %vm272, %v56, 0
  %vm276 = vcmask 1041408
  %v278 = vsel %vm276, %v252, 0
  %280 = vmatpush.msra.mxu0 0.0
  %281 = vmatpush.msra.mxu0 0.0
  %282 = vmatpush.msra.mxu0 0.0
  %283 = vmatpush.msra.mxu0 0.0
  %284 = vmatpush.msra.mxu0 0.0
  %285 = vmatpush.msra.mxu0 0.0
  %286 = vmatpush.msra.mxu0 0.0
  %287 = vmatpush.msra.mxu0 0.0
  %288 = vmatpush.msra.mxu0 0.0
  %289 = vmatpush.msra.mxu0 0.0
  %290 = vmatpush.msra.mxu0 0.0
  %291 = vmatpush.msra.mxu0 0.0
  %292 = vmatpush.msra.mxu0 0.0
  %293 = vmatpush.msra.mxu0 0.0
  %294 = vmatpush.msra.mxu0 0.0
  %295 = vmatpush.msra.mxu0 %v278
  %296 = vmatmul.f32.gmra.mxu0 %v274
  %v297 = vpop.f32.mrf.mxu0
  %v298 = vadd.f32 0.0, %v297
  %299 = vdwg.mxu0
  %v300 = vmul.f32 %v298, %v58
  %v301 = vsel %vm162, %v300, 0.0
  %302 = vadd.xlane.f32.xlu0 %v301
  %v303 = vpop.xlane.xlu0 %302
  %305 = vrot.lane.b32.xlu0 %v271, 124
  %v306 = vpop.permute.xlu0 %305
  %v307 = vsel %vm276, %v306, 0
  %309 = vmatpush.msra.mxu0 0.0
  %310 = vmatpush.msra.mxu0 0.0
  %311 = vmatpush.msra.mxu0 0.0
  %312 = vmatpush.msra.mxu0 0.0
  %313 = vmatpush.msra.mxu0 0.0
  %314 = vmatpush.msra.mxu0 0.0
  %315 = vmatpush.msra.mxu0 0.0
  %316 = vmatpush.msra.mxu0 0.0
  %317 = vmatpush.msra.mxu0 0.0
  %318 = vmatpush.msra.mxu0 0.0
  %319 = vmatpush.msra.mxu0 0.0
  %320 = vmatpush.msra.mxu0 0.0
  %321 = vmatpush.msra.mxu0 0.0
  %322 = vmatpush.msra.mxu0 0.0
  %323 = vmatpush.msra.mxu0 0.0
  %324 = vmatpush.msra.mxu0 %v307
  %325 = vmatmul.f32.gmra.mxu0 %v274
  %v326 = vpop.f32.mrf.mxu0
  %v327 = vadd.f32 0.0, %v326
  %328 = vdwg.mxu0
  %v329 = vmul.f32 %v327, %v58
  %v330 = vsel %vm162, %v329, 0.0
  %331 = vadd.xlane.f32.xlu0 %v330
  %v332 = vpop.xlane.xlu0 %331
  %333 = vmatpush.msra.mxu0 0.0
  %334 = vmatpush.msra.mxu0 0.0
  %335 = vmatpush.msra.mxu0 0.0
  %336 = vmatpush.msra.mxu0 0.0
  %337 = vmatpush.msra.mxu0 0.0
  %338 = vmatpush.msra.mxu0 0.0
  %339 = vmatpush.msra.mxu0 0.0
  %340 = vmatpush.msra.mxu0 0.0
  %341 = vmatpush.msra.mxu0 0.0
  %342 = vmatpush.msra.mxu0 0.0
  %343 = vmatpush.msra.mxu0 0.0
  %344 = vmatpush.msra.mxu0 0.0
  %345 = vmatpush.msra.mxu0 0.0
  %346 = vmatpush.msra.mxu0 0.0
  %347 = vmatpush.msra.mxu0 0.0
  %348 = vmatpush.msra.mxu0 %v129
  %349 = vmatmul.f32.gmra.mxu0 %v139
  %v350 = vpop.f32.mrf.mxu0
  %v351 = vadd.f32 0.0, %v350
  %352 = vdwg.mxu0
  %v353 = vmul.f32 %v351, 0.25
  %vm354 = vcmask 519168
  %v355 = vsel %vm354, %v129, -inf
  %v356 = vrot.slane %v355, 4
  %v357 = vmax.f32 %v355, %v356
  %v358 = vrot.slane %v357, 2
  %v359 = vmax.f32 %v357, %v358
  %v360 = vrot.slane %v359, 1
  %v361 = vmax.f32 %v359, %v360
  %vm362 = vcmask 523268
  %v363 = vsel %vm362, %v129, -inf
  %v364 = vrot.slane %v363, 4
  %v365 = vmax.f32 %v363, %v364
  %v366 = vrot.slane %v365, 2
  %v367 = vmax.f32 %v365, %v366
  %v368 = vrot.slane %v367, 1
  %v369 = vmax.f32 %v367, %v368
  %vm370 = vcmask 1040384
  %v371 = vsel %vm370, %v361, %v369
  %373 = vrot.lane.b32.xlu0 %v353, 64
  %v374 = vpop.permute.xlu0 %373
  %v376 = vsel %vm131, %v371, %v374
  %v377 = vld [vmem:[%s4] sm:$0xff]
  %v378 = vld [vmem:[%s4 + $0x8] sm:$0xff]
  %v379 = vld [vmem:[%s4 + $0x10] sm:$0xff]
  %v380 = vld [vmem:[%s4 + $0x18] sm:$0xff]
  %v381 = vld [vmem:[%s4 + $0x20] sm:$0xff]
  %v382 = vld [vmem:[%s4 + $0x28] sm:$0xff]
  %v383 = vld [vmem:[%s4 + $0x30] sm:$0xff]
  %v384 = vld [vmem:[%s4 + $0x38] sm:$0xff]
  %v385 = vld [vmem:[%s4 + $0x40] sm:$0xff]
  %v386 = vld [vmem:[%s4 + $0x48] sm:$0xff]
  %v387 = vld [vmem:[%s4 + $0x50] sm:$0xff]
  %v388 = vld [vmem:[%s4 + $0x58] sm:$0xff]
  %v389 = vld [vmem:[%s4 + $0x60] sm:$0xff]
  %v390 = vld [vmem:[%s4 + $0x68] sm:$0xff]
  %v391 = vld [vmem:[%s4 + $0x70] sm:$0xff]
  %v392 = vld [vmem:[%s4 + $0x78] sm:$0xff]
  %v393 = vld [vmem:[%s5] sm:$0x1]
  %v395 = vperm.slane %v393, 0
  %397 = vmatpush.msra.mxu0 %v392
  %398 = vmatpush.msra.mxu0 %v391
  %399 = vmatpush.msra.mxu0 %v390
  %400 = vmatpush.msra.mxu0 %v389
  %401 = vmatpush.msra.mxu0 %v388
  %402 = vmatpush.msra.mxu0 %v387
  %403 = vmatpush.msra.mxu0 %v386
  %404 = vmatpush.msra.mxu0 %v385
  %405 = vmatpush.msra.mxu0 %v384
  %406 = vmatpush.msra.mxu0 %v383
  %407 = vmatpush.msra.mxu0 %v382
  %408 = vmatpush.msra.mxu0 %v381
  %409 = vmatpush.msra.mxu0 %v380
  %410 = vmatpush.msra.mxu0 %v379
  %411 = vmatpush.msra.mxu0 %v378
  %412 = vmatpush.msra.mxu0 %v377
  %413 = vmatmul.f32.gmra.mxu0 %v376
  %v414 = vpop.f32.mrf.mxu0
  %v415 = vadd.f32 %v395, %v414
  %416 = vdwg.mxu0
  %v417 = vmax.f32 %v415, 0.0
  %v418 = vld [vmem:[%s6] sm:$0xff]
  %v419 = vld [vmem:[%s6 + $0x8] sm:$0xff]
  %v420 = vld [vmem:[%s6 + $0x10] sm:$0xff]
  %v421 = vld [vmem:[%s6 + $0x18] sm:$0xff]
  %v422 = vld [vmem:[%s6 + $0x20] sm:$0xff]
  %v423 = vld [vmem:[%s6 + $0x28] sm:$0xff]
  %v424 = vld [vmem:[%s6 + $0x30] sm:$0xff]
  %v425 = vld [vmem:[%s6 + $0x38] sm:$0xff]
  %v426 = vld [vmem:[%s6 + $0x40] sm:$0xff]
  %v427 = vld [vmem:[%s6 + $0x48] sm:$0xff]
  %v428 = vld [vmem:[%s6 + $0x50] sm:$0xff]
  %v429 = vld [vmem:[%s6 + $0x58] sm:$0xff]
  %v430 = vld [vmem:[%s6 + $0x60] sm:$0xff]
  %v431 = vld [vmem:[%s6 + $0x68] sm:$0xff]
  %v432 = vld [vmem:[%s6 + $0x70] sm:$0xff]
  %v433 = vld [vmem:[%s6 + $0x78] sm:$0xff]
  %v434 = vld [vmem:[%s7] sm:$0x1]
  %v436 = vperm.slane %v434, 0
  %438 = vmatpush.msra.mxu0 %v433
  %439 = vmatpush.msra.mxu0 %v432
  %440 = vmatpush.msra.mxu0 %v431
  %441 = vmatpush.msra.mxu0 %v430
  %442 = vmatpush.msra.mxu0 %v429
  %443 = vmatpush.msra.mxu0 %v428
  %444 = vmatpush.msra.mxu0 %v427
  %445 = vmatpush.msra.mxu0 %v426
  %446 = vmatpush.msra.mxu0 %v425
  %447 = vmatpush.msra.mxu0 %v424
  %448 = vmatpush.msra.mxu0 %v423
  %449 = vmatpush.msra.mxu0 %v422
  %450 = vmatpush.msra.mxu0 %v421
  %451 = vmatpush.msra.mxu0 %v420
  %452 = vmatpush.msra.mxu0 %v419
  %453 = vmatpush.msra.mxu0 %v418
  %454 = vmatmul.f32.gmra.mxu0 %v417
  %v455 = vpop.f32.mrf.mxu0
  %v456 = vadd.f32 %v436, %v455
  %457 = vdwg.mxu0
  %459 = vrot.lane.b32.xlu0 %v456, 64
  %v460 = vpop.permute.xlu0 %459
  %v462 = vmax.f32 %v456, %v460
  %v463 = vsub.f32 %v456, %v462
  %v464 = vmul.f32 %v463, 1.442695
  %v465 = vpow.pop %v464
  %467 = vrot.lane.b32.xlu0 %v462, 64
  %v468 = vpop.permute.xlu0 %467
  %v470 = vsub.f32 %v456, %v468
  %v471 = vmul.f32 %v470, 1.442695
  %v472 = vpow.pop %v471
  %474 = vrot.lane.b32.xlu0 %v472, 64
  %v475 = vpop.permute.xlu0 %474
  %v477 = vadd.f32 %v465, %v475
  %v478 = vrcp.pop %v477
  %v479 = vmul.f32 %v477, %v478
  %v480 = vsub.f32 1.0, %v479
  %v481 = vmul.f32 %v478, %v480
  %v482 = vadd.f32 %v478, %v481
  %vm483 = vweird.f32 %v477
  %vm484 = vweird.f32 %v478
  %vm485 = vmor %vm483, %vm484
  %v486 = vsel %vm485, %v478, %v482
  %v487 = vand.u32 2147483647, %v477
  %vm488 = vcmp.eq.f32.partialorder %v487, 8.507059e+37
  %v489 = vand.u32 %v477, 2147483648
  %v490 = vor.u32 1.1754944e-38, %v489
  %v491 = vsel %vm488, %v490, %v486
  %v492 = vmul.f32 %v465, %v491
  %494 = vrot.lane.b32.xlu0 %v477, 64
  %v495 = vpop.permute.xlu0 %494
  %v497 = vrcp.pop %v495
  %v498 = vmul.f32 %v495, %v497
  %v499 = vsub.f32 1.0, %v498
  %v500 = vmul.f32 %v497, %v499
  %v501 = vadd.f32 %v497, %v500
  %vm502 = vweird.f32 %v495
  %vm503 = vweird.f32 %v497
  %vm504 = vmor %vm502, %vm503
  %v505 = vsel %vm504, %v497, %v501
  %v506 = vand.u32 2147483647, %v495
  %vm507 = vcmp.eq.f32.partialorder %v506, 8.507059e+37
  %v508 = vand.u32 %v495, 2147483648
  %v509 = vor.u32 1.1754944e-38, %v508
  %v510 = vsel %vm507, %v509, %v505
  %v511 = vmul.f32 %v472, %v510
  %v512 = vld [vmem:[%s9] sm:$0xff]
  %v513 = vld [vmem:[%s9 + $0x8] sm:$0xff]
  %v514 = vld [vmem:[%s9 + $0x10] sm:$0xff]
  %v515 = vld [vmem:[%s9 + $0x18] sm:$0xff]
  %v516 = vld [vmem:[%s9 + $0x20] sm:$0xff]
  %v517 = vld [vmem:[%s9 + $0x28] sm:$0xff]
  %v518 = vld [vmem:[%s9 + $0x30] sm:$0xff]
  %v519 = vld [vmem:[%s9 + $0x38] sm:$0xff]
  %v520 = vld [vmem:[%s9 + $0x40] sm:$0xff]
  %v521 = vld [vmem:[%s9 + $0x48] sm:$0xff]
  %v522 = vld [vmem:[%s9 + $0x50] sm:$0xff]
  %v523 = vld [vmem:[%s9 + $0x58] sm:$0xff]
  %v524 = vld [vmem:[%s9 + $0x60] sm:$0xff]
  %v525 = vld [vmem:[%s9 + $0x68] sm:$0xff]
  %v526 = vld [vmem:[%s9 + $0x70] sm:$0xff]
  %v527 = vld [vmem:[%s9 + $0x78] sm:$0xff]
  %v529 = vsel %vm131, %v492, 0
  %531 = vmatpush.msra.mxu0 0.0
  %532 = vmatpush.msra.mxu0 0.0
  %533 = vmatpush.msra.mxu0 0.0
  %534 = vmatpush.msra.mxu0 0.0
  %535 = vmatpush.msra.mxu0 0.0
  %536 = vmatpush.msra.mxu0 0.0
  %537 = vmatpush.msra.mxu0 0.0
  %538 = vmatpush.msra.mxu0 0.0
  %539 = vmatpush.msra.mxu0 %v526
  %540 = vmatpush.msra.mxu0 %v524
  %541 = vmatpush.msra.mxu0 %v522
  %542 = vmatpush.msra.mxu0 %v520
  %543 = vmatpush.msra.mxu0 %v518
  %544 = vmatpush.msra.mxu0 %v516
  %545 = vmatpush.msra.mxu0 %v514
  %546 = vmatpush.msra.mxu0 %v512
  %547 = vmatmul.f32.gmra.mxu0 %v529
  %v548 = vpop.f32.mrf.mxu0
  %v549 = vadd.f32 0.0, %v548
  %550 = vdwg.mxu0
  %551 = vmatpush.msra.mxu0 0.0
  %552 = vmatpush.msra.mxu0 0.0
  %553 = vmatpush.msra.mxu0 0.0
  %554 = vmatpush.msra.mxu0 0.0
  %555 = vmatpush.msra.mxu0 0.0
  %556 = vmatpush.msra.mxu0 0.0
  %557 = vmatpush.msra.mxu0 0.0
  %558 = vmatpush.msra.mxu0 0.0
  %559 = vmatpush.msra.mxu0 %v527
  %560 = vmatpush.msra.mxu0 %v525
  %561 = vmatpush.msra.mxu0 %v523
  %562 = vmatpush.msra.mxu0 %v521
  %563 = vmatpush.msra.mxu0 %v519
  %564 = vmatpush.msra.mxu0 %v517
  %565 = vmatpush.msra.mxu0 %v515
  %566 = vmatpush.msra.mxu0 %v513
  %567 = vmatmul.f32.gmra.mxu0 %v529
  %v568 = vpop.f32.mrf.mxu0
  %v569 = vadd.f32 0.0, %v568
  %570 = vdwg.mxu0
  %v572 = vsel %vm276, %v549, 0
  %v575 = vsel %vm276, %v569, 0
  %577 = vmatpush.msra.mxu0 0.0
  %578 = vmatpush.msra.mxu0 0.0
  %579 = vmatpush.msra.mxu0 0.0
  %580 = vmatpush.msra.mxu0 0.0
  %581 = vmatpush.msra.mxu0 0.0
  %582 = vmatpush.msra.mxu0 0.0
  %583 = vmatpush.msra.mxu0 0.0
  %584 = vmatpush.msra.mxu0 0.0
  %585 = vmatpush.msra.mxu0 0.0
  %586 = vmatpush.msra.mxu0 0.0
  %587 = vmatpush.msra.mxu0 0.0
  %588 = vmatpush.msra.mxu0 0.0
  %589 = vmatpush.msra.mxu0 0.0
  %590 = vmatpush.msra.mxu0 0.0
  %591 = vmatpush.msra.mxu0 0.0
  %592 = vmatpush.msra.mxu0 %v572
  %593 = vmatmul.f32.gmra.mxu0 %v274
  %v594 = vpop.f32.mrf.mxu0
  %v595 = vadd.f32 0.0, %v594
  %596 = vdwg.mxu0
  %597 = vmatpush.msra.mxu0 0.0
  %598 = vmatpush.msra.mxu0 0.0
  %599 = vmatpush.msra.mxu0 0.0
  %600 = vmatpush.msra.mxu0 0.0
  %601 = vmatpush.msra.mxu0 0.0
  %602 = vmatpush.msra.mxu0 0.0
  %603 = vmatpush.msra.mxu0 0.0
  %604 = vmatpush.msra.mxu0 0.0
  %605 = vmatpush.msra.mxu0 0.0
  %606 = vmatpush.msra.mxu0 0.0
  %607 = vmatpush.msra.mxu0 0.0
  %608 = vmatpush.msra.mxu0 0.0
  %609 = vmatpush.msra.mxu0 0.0
  %610 = vmatpush.msra.mxu0 0.0
  %611 = vmatpush.msra.mxu0 0.0
  %612 = vmatpush.msra.mxu0 %v575
  %613 = vmatmul.f32.gmra.mxu0 %v274
  %v614 = vpop.f32.mrf.mxu0
  %v615 = vadd.f32 0.0, %v614
  %616 = vdwg.mxu0
  %v617 = vadd.f32 %v303, %v595
  %v618 = vadd.f32 %v303, %v615
  %v619 = vmul.f32 %v53, %v617
  %v620 = vmul.f32 %v54, %v618
  %622 = vrot.lane.b32.xlu0 %v511, 64
  %v623 = vpop.permute.xlu0 %622
  %v624 = vsel %vm276, %v623, 0
  %626 = vmatpush.msra.mxu0 0.0
  %627 = vmatpush.msra.mxu0 0.0
  %628 = vmatpush.msra.mxu0 0.0
  %629 = vmatpush.msra.mxu0 0.0
  %630 = vmatpush.msra.mxu0 0.0
  %631 = vmatpush.msra.mxu0 0.0
  %632 = vmatpush.msra.mxu0 0.0
  %633 = vmatpush.msra.mxu0 0.0
  %634 = vmatpush.msra.mxu0 0.0
  %635 = vmatpush.msra.mxu0 0.0
  %636 = vmatpush.msra.mxu0 0.0
  %637 = vmatpush.msra.mxu0 0.0
  %638 = vmatpush.msra.mxu0 0.0
  %639 = vmatpush.msra.mxu0 0.0
  %640 = vmatpush.msra.mxu0 0.0
  %641 = vmatpush.msra.mxu0 %v624
  %642 = vmatmul.f32.gmra.mxu0 %v274
  %v643 = vpop.f32.mrf.mxu0
  %v644 = vadd.f32 0.0, %v643
  %645 = vdwg.mxu0
  %v646 = vadd.f32 %v332, %v644
  %v647 = vmul.f32 %v55, %v646
  %v648 = vld [vmem:[%s10] sm:$0xff]
  %v649 = vld [vmem:[%s10 + $0x8] sm:$0xff]
  %v650 = vld [vmem:[%s10 + $0x10] sm:$0xff]
  %v651 = vld [vmem:[%s10 + $0x18] sm:$0xff]
  %v652 = vld [vmem:[%s10 + $0x20] sm:$0xff]
  %v653 = vld [vmem:[%s10 + $0x28] sm:$0xff]
  %v654 = vld [vmem:[%s10 + $0x30] sm:$0xff]
  %v655 = vld [vmem:[%s10 + $0x38] sm:$0xff]
  %v656 = vld [vmem:[%s10 + $0x40] sm:$0xff]
  %v658 = vsel %vm137, %v648, 0
  %v661 = vsel %vm137, %v649, 0
  %v664 = vsel %vm137, %v650, 0
  %v667 = vsel %vm137, %v651, 0
  %v670 = vsel %vm137, %v652, 0
  %v673 = vsel %vm137, %v653, 0
  %v676 = vsel %vm137, %v654, 0
  %v679 = vsel %vm137, %v655, 0
  %v682 = vsel %vm137, %v656, 0
  %684 = vmatpush.msra.mxu0 0.0
  %685 = vmatpush.msra.mxu0 0.0
  %686 = vmatpush.msra.mxu0 0.0
  %687 = vmatpush.msra.mxu0 0.0
  %688 = vmatpush.msra.mxu0 0.0
  %689 = vmatpush.msra.mxu0 0.0
  %690 = vmatpush.msra.mxu0 0.0
  %691 = vmatpush.msra.mxu0 0.0
  %692 = vmatpush.msra.mxu0 0.0
  %693 = vmatpush.msra.mxu0 0.0
  %694 = vmatpush.msra.mxu0 0.0
  %695 = vmatpush.msra.mxu0 0.0
  %696 = vmatpush.msra.mxu0 0.0
  %697 = vmatpush.msra.mxu0 0.0
  %698 = vmatpush.msra.mxu0 0.0
  %699 = vmatpush.msra.mxu0 %v647
  %700 = vmatmul.f32.gmra.mxu0 %v658
  %v701 = vpop.f32.mrf.mxu0
  %v702 = vadd.f32 0.0, %v701
  %703 = vmatmul.f32.gmra.mxu0 %v661
  %v704 = vpop.f32.mrf.mxu0
  %v705 = vadd.f32 0.0, %v704
  %706 = vmatmul.f32.gmra.mxu0 %v664
  %v707 = vpop.f32.mrf.mxu0
  %v708 = vadd.f32 0.0, %v707
  %709 = vmatmul.f32.gmra.mxu0 %v667
  %v710 = vpop.f32.mrf.mxu0
  %v711 = vadd.f32 0.0, %v710
  %712 = vmatmul.f32.gmra.mxu0 %v670
  %v713 = vpop.f32.mrf.mxu0
  %v714 = vadd.f32 0.0, %v713
  %715 = vmatmul.f32.gmra.mxu0 %v673
  %v716 = vpop.f32.mrf.mxu0
  %v717 = vadd.f32 0.0, %v716
  %718 = vmatmul.f32.gmra.mxu0 %v676
  %v719 = vpop.f32.mrf.mxu0
  %v720 = vadd.f32 0.0, %v719
  %721 = vmatmul.f32.gmra.mxu0 %v679
  %v722 = vpop.f32.mrf.mxu0
  %v723 = vadd.f32 0.0, %v722
  %724 = vmatmul.f32.gmra.mxu0 %v682
  %v725 = vpop.f32.mrf.mxu0
  %v726 = vadd.f32 0.0, %v725
  %727 = vdwg.mxu0
  %v728 = vld [vmem:[%s11] sm:$0xff]
  %v729 = vld [vmem:[%s11 + $0x8] sm:$0xff]
  %v730 = vld [vmem:[%s11 + $0x10] sm:$0xff]
  %v731 = vld [vmem:[%s11 + $0x18] sm:$0xff]
  %v732 = vld [vmem:[%s11 + $0x20] sm:$0xff]
  %v733 = vld [vmem:[%s11 + $0x28] sm:$0xff]
  %v734 = vld [vmem:[%s11 + $0x30] sm:$0xff]
  %v735 = vld [vmem:[%s11 + $0x38] sm:$0xff]
  %v736 = vld [vmem:[%s11 + $0x40] sm:$0xff]
  %v737 = vld [vmem:[%s11 + $0x48] sm:$0xff]
  %v738 = vld [vmem:[%s11 + $0x50] sm:$0xff]
  %v739 = vld [vmem:[%s11 + $0x58] sm:$0xff]
  %v740 = vld [vmem:[%s11 + $0x60] sm:$0xff]
  %v741 = vld [vmem:[%s11 + $0x68] sm:$0xff]
  %v742 = vld [vmem:[%s11 + $0x70] sm:$0xff]
  %v743 = vld [vmem:[%s11 + $0x78] sm:$0xff]
  %s744 = scalar_lea.vmem %s11, 128
  %v745 = vld [vmem:[%s744] sm:$0xff]
  %v746 = vld [vmem:[%s744 + $0x8] sm:$0xff]
  %v747 = vld [vmem:[%s744 + $0x10] sm:$0xff]
  %v748 = vld [vmem:[%s744 + $0x18] sm:$0xff]
  %v749 = vld [vmem:[%s744 + $0x20] sm:$0xff]
  %v750 = vld [vmem:[%s744 + $0x28] sm:$0xff]
  %v751 = vld [vmem:[%s744 + $0x30] sm:$0xff]
  %v752 = vld [vmem:[%s744 + $0x38] sm:$0xff]
  %v753 = vld [vmem:[%s744 + $0x40] sm:$0xff]
  %v754 = vld [vmem:[%s744 + $0x48] sm:$0xff]
  %v755 = vld [vmem:[%s744 + $0x50] sm:$0xff]
  %v756 = vld [vmem:[%s744 + $0x58] sm:$0xff]
  %v757 = vld [vmem:[%s744 + $0x60] sm:$0xff]
  %v758 = vld [vmem:[%s744 + $0x68] sm:$0xff]
  %v759 = vld [vmem:[%s744 + $0x70] sm:$0xff]
  %v760 = vld [vmem:[%s744 + $0x78] sm:$0xff]
  %v762 = vsel %vm131, %v705, 0
  %764 = vmatpush.msra.mxu0 0.0
  %765 = vmatpush.msra.mxu0 0.0
  %766 = vmatpush.msra.mxu0 0.0
  %767 = vmatpush.msra.mxu0 0.0
  %768 = vmatpush.msra.mxu0 0.0
  %769 = vmatpush.msra.mxu0 0.0
  %770 = vmatpush.msra.mxu0 0.0
  %771 = vmatpush.msra.mxu0 0.0
  %772 = vmatpush.msra.mxu0 %v759
  %773 = vmatpush.msra.mxu0 %v757
  %774 = vmatpush.msra.mxu0 %v755
  %775 = vmatpush.msra.mxu0 %v753
  %776 = vmatpush.msra.mxu0 %v751
  %777 = vmatpush.msra.mxu0 %v749
  %778 = vmatpush.msra.mxu0 %v747
  %779 = vmatpush.msra.mxu0 %v745
  %780 = vmatmul.f32.gmra.mxu0 %v762
  %v781 = vpop.f32.mrf.mxu0
  %v782 = vadd.f32 0.0, %v781
  %783 = vdwg.mxu0
  %784 = vmatpush.msra.mxu0 0.0
  %785 = vmatpush.msra.mxu0 0.0
  %786 = vmatpush.msra.mxu0 0.0
  %787 = vmatpush.msra.mxu0 0.0
  %788 = vmatpush.msra.mxu0 0.0
  %789 = vmatpush.msra.mxu0 0.0
  %790 = vmatpush.msra.mxu0 0.0
  %791 = vmatpush.msra.mxu0 0.0
  %792 = vmatpush.msra.mxu0 %v760
  %793 = vmatpush.msra.mxu0 %v758
  %794 = vmatpush.msra.mxu0 %v756
  %795 = vmatpush.msra.mxu0 %v754
  %796 = vmatpush.msra.mxu0 %v752
  %797 = vmatpush.msra.mxu0 %v750
  %798 = vmatpush.msra.mxu0 %v748
  %799 = vmatpush.msra.mxu0 %v746
  %800 = vmatmul.f32.gmra.mxu0 %v762
  %v801 = vpop.f32.mrf.mxu0
  %v802 = vadd.f32 0.0, %v801
  %803 = vdwg.mxu0
  %v805 = vsel %vm131, %v702, 0
  %807 = vmatpush.msra.mxu0 0.0
  %808 = vmatpush.msra.mxu0 0.0
  %809 = vmatpush.msra.mxu0 0.0
  %810 = vmatpush.msra.mxu0 0.0
  %811 = vmatpush.msra.mxu0 0.0
  %812 = vmatpush.msra.mxu0 0.0
  %813 = vmatpush.msra.mxu0 0.0
  %814 = vmatpush.msra.mxu0 0.0
  %815 = vmatpush.msra.mxu0 %v742
  %816 = vmatpush.msra.mxu0 %v740
  %817 = vmatpush.msra.mxu0 %v738
  %818 = vmatpush.msra.mxu0 %v736
  %819 = vmatpush.msra.mxu0 %v734
  %820 = vmatpush.msra.mxu0 %v732
  %821 = vmatpush.msra.mxu0 %v730
  %822 = vmatpush.msra.mxu0 %v728
  %823 = vmatmul.f32.gmra.mxu0 %v805
  %v824 = vpop.f32.mrf.mxu0
  %v825 = vadd.f32 %v782, %v824
  %826 = vdwg.mxu0
  %827 = vmatpush.msra.mxu0 0.0
  %828 = vmatpush.msra.mxu0 0.0
  %829 = vmatpush.msra.mxu0 0.0
  %830 = vmatpush.msra.mxu0 0.0
  %831 = vmatpush.msra.mxu0 0.0
  %832 = vmatpush.msra.mxu0 0.0
  %833 = vmatpush.msra.mxu0 0.0
  %834 = vmatpush.msra.mxu0 0.0
  %835 = vmatpush.msra.mxu0 %v743
  %836 = vmatpush.msra.mxu0 %v741
  %837 = vmatpush.msra.mxu0 %v739
  %838 = vmatpush.msra.mxu0 %v737
  %839 = vmatpush.msra.mxu0 %v735
  %840 = vmatpush.msra.mxu0 %v733
  %841 = vmatpush.msra.mxu0 %v731
  %842 = vmatpush.msra.mxu0 %v729
  %843 = vmatmul.f32.gmra.mxu0 %v805
  %v844 = vpop.f32.mrf.mxu0
  %v845 = vadd.f32 %v802, %v844
  %846 = vdwg.mxu0
  %s847 = scalar_lea.vmem %s11, 256
  %v848 = vld [vmem:[%s847] sm:$0xff]
  %v849 = vld [vmem:[%s847 + $0x8] sm:$0xff]
  %v850 = vld [vmem:[%s847 + $0x10] sm:$0xff]
  %v851 = vld [vmem:[%s847 + $0x18] sm:$0xff]
  %v852 = vld [vmem:[%s847 + $0x20] sm:$0xff]
  %v853 = vld [vmem:[%s847 + $0x28] sm:$0xff]
  %v854 = vld [vmem:[%s847 + $0x30] sm:$0xff]
  %v855 = vld [vmem:[%s847 + $0x38] sm:$0xff]
  %v856 = vld [vmem:[%s847 + $0x40] sm:$0xff]
  %v857 = vld [vmem:[%s847 + $0x48] sm:$0xff]
  %v858 = vld [vmem:[%s847 + $0x50] sm:$0xff]
  %v859 = vld [vmem:[%s847 + $0x58] sm:$0xff]
  %v860 = vld [vmem:[%s847 + $0x60] sm:$0xff]
  %v861 = vld [vmem:[%s847 + $0x68] sm:$0xff]
  %v862 = vld [vmem:[%s847 + $0x70] sm:$0xff]
  %v863 = vld [vmem:[%s847 + $0x78] sm:$0xff]
  %v865 = vsel %vm131, %v708, 0
  %867 = vmatpush.msra.mxu0 0.0
  %868 = vmatpush.msra.mxu0 0.0
  %869 = vmatpush.msra.mxu0 0.0
  %870 = vmatpush.msra.mxu0 0.0
  %871 = vmatpush.msra.mxu0 0.0
  %872 = vmatpush.msra.mxu0 0.0
  %873 = vmatpush.msra.mxu0 0.0
  %874 = vmatpush.msra.mxu0 0.0
  %875 = vmatpush.msra.mxu0 %v862
  %876 = vmatpush.msra.mxu0 %v860
  %877 = vmatpush.msra.mxu0 %v858
  %878 = vmatpush.msra.mxu0 %v856
  %879 = vmatpush.msra.mxu0 %v854
  %880 = vmatpush.msra.mxu0 %v852
  %881 = vmatpush.msra.mxu0 %v850
  %882 = vmatpush.msra.mxu0 %v848
  %883 = vmatmul.f32.gmra.mxu0 %v865
  %v884 = vpop.f32.mrf.mxu0
  %v885 = vadd.f32 0.0, %v884
  %886 = vdwg.mxu0
  %887 = vmatpush.msra.mxu0 0.0
  %888 = vmatpush.msra.mxu0 0.0
  %889 = vmatpush.msra.mxu0 0.0
  %890 = vmatpush.msra.mxu0 0.0
  %891 = vmatpush.msra.mxu0 0.0
  %892 = vmatpush.msra.mxu0 0.0
  %893 = vmatpush.msra.mxu0 0.0
  %894 = vmatpush.msra.mxu0 0.0
  %895 = vmatpush.msra.mxu0 %v863
  %896 = vmatpush.msra.mxu0 %v861
  %897 = vmatpush.msra.mxu0 %v859
  %898 = vmatpush.msra.mxu0 %v857
  %899 = vmatpush.msra.mxu0 %v855
  %900 = vmatpush.msra.mxu0 %v853
  %901 = vmatpush.msra.mxu0 %v851
  %902 = vmatpush.msra.mxu0 %v849
  %903 = vmatmul.f32.gmra.mxu0 %v865
  %v904 = vpop.f32.mrf.mxu0
  %v905 = vadd.f32 0.0, %v904
  %906 = vdwg.mxu0
  %v907 = vadd.f32 %v825, %v885
  %v908 = vadd.f32 %v845, %v905
  %s909 = scalar_lea.vmem %s11, 384
  %v910 = vld [vmem:[%s909] sm:$0xff]
  %v911 = vld [vmem:[%s909 + $0x8] sm:$0xff]
  %v912 = vld [vmem:[%s909 + $0x10] sm:$0xff]
  %v913 = vld [vmem:[%s909 + $0x18] sm:$0xff]
  %v914 = vld [vmem:[%s909 + $0x20] sm:$0xff]
  %v915 = vld [vmem:[%s909 + $0x28] sm:$0xff]
  %v916 = vld [vmem:[%s909 + $0x30] sm:$0xff]
  %v917 = vld [vmem:[%s909 + $0x38] sm:$0xff]
  %v918 = vld [vmem:[%s909 + $0x40] sm:$0xff]
  %v919 = vld [vmem:[%s909 + $0x48] sm:$0xff]
  %v920 = vld [vmem:[%s909 + $0x50] sm:$0xff]
  %v921 = vld [vmem:[%s909 + $0x58] sm:$0xff]
  %v922 = vld [vmem:[%s909 + $0x60] sm:$0xff]
  %v923 = vld [vmem:[%s909 + $0x68] sm:$0xff]
  %v924 = vld [vmem:[%s909 + $0x70] sm:$0xff]
  %v925 = vld [vmem:[%s909 + $0x78] sm:$0xff]
  %v927 = vsel %vm131, %v711, 0
  %929 = vmatpush.msra.mxu0 0.0
  %930 = vmatpush.msra.mxu0 0.0
  %931 = vmatpush.msra.mxu0 0.0
  %932 = vmatpush.msra.mxu0 0.0
  %933 = vmatpush.msra.mxu0 0.0
  %934 = vmatpush.msra.mxu0 0.0
  %935 = vmatpush.msra.mxu0 0.0
  %936 = vmatpush.msra.mxu0 0.0
  %937 = vmatpush.msra.mxu0 %v924
  %938 = vmatpush.msra.mxu0 %v922
  %939 = vmatpush.msra.mxu0 %v920
  %940 = vmatpush.msra.mxu0 %v918
  %941 = vmatpush.msra.mxu0 %v916
  %942 = vmatpush.msra.mxu0 %v914
  %943 = vmatpush.msra.mxu0 %v912
  %944 = vmatpush.msra.mxu0 %v910
  %945 = vmatmul.f32.gmra.mxu0 %v927
  %v946 = vpop.f32.mrf.mxu0
  %v947 = vadd.f32 0.0, %v946
  %948 = vdwg.mxu0
  %949 = vmatpush.msra.mxu0 0.0
  %950 = vmatpush.msra.mxu0 0.0
  %951 = vmatpush.msra.mxu0 0.0
  %952 = vmatpush.msra.mxu0 0.0
  %953 = vmatpush.msra.mxu0 0.0
  %954 = vmatpush.msra.mxu0 0.0
  %955 = vmatpush.msra.mxu0 0.0
  %956 = vmatpush.msra.mxu0 0.0
  %957 = vmatpush.msra.mxu0 %v925
  %958 = vmatpush.msra.mxu0 %v923
  %959 = vmatpush.msra.mxu0 %v921
  %960 = vmatpush.msra.mxu0 %v919
  %961 = vmatpush.msra.mxu0 %v917
  %962 = vmatpush.msra.mxu0 %v915
  %963 = vmatpush.msra.mxu0 %v913
  %964 = vmatpush.msra.mxu0 %v911
  %965 = vmatmul.f32.gmra.mxu0 %v927
  %v966 = vpop.f32.mrf.mxu0
  %v967 = vadd.f32 0.0, %v966
  %968 = vdwg.mxu0
  %v969 = vadd.f32 %v907, %v947
  %v970 = vadd.f32 %v908, %v967
  %s971 = scalar_lea.vmem %s11, 512
  %v972 = vld [vmem:[%s971] sm:$0xff]
  %v973 = vld [vmem:[%s971 + $0x8] sm:$0xff]
  %v974 = vld [vmem:[%s971 + $0x10] sm:$0xff]
  %v975 = vld [vmem:[%s971 + $0x18] sm:$0xff]
  %v976 = vld [vmem:[%s971 + $0x20] sm:$0xff]
  %v977 = vld [vmem:[%s971 + $0x28] sm:$0xff]
  %v978 = vld [vmem:[%s971 + $0x30] sm:$0xff]
  %v979 = vld [vmem:[%s971 + $0x38] sm:$0xff]
  %v980 = vld [vmem:[%s971 + $0x40] sm:$0xff]
  %v981 = vld [vmem:[%s971 + $0x48] sm:$0xff]
  %v982 = vld [vmem:[%s971 + $0x50] sm:$0xff]
  %v983 = vld [vmem:[%s971 + $0x58] sm:$0xff]
  %v984 = vld [vmem:[%s971 + $0x60] sm:$0xff]
  %v985 = vld [vmem:[%s971 + $0x68] sm:$0xff]
  %v986 = vld [vmem:[%s971 + $0x70] sm:$0xff]
  %v987 = vld [vmem:[%s971 + $0x78] sm:$0xff]
  %v989 = vsel %vm131, %v714, 0
  %991 = vmatpush.msra.mxu0 0.0
  %992 = vmatpush.msra.mxu0 0.0
  %993 = vmatpush.msra.mxu0 0.0
  %994 = vmatpush.msra.mxu0 0.0
  %995 = vmatpush.msra.mxu0 0.0
  %996 = vmatpush.msra.mxu0 0.0
  %997 = vmatpush.msra.mxu0 0.0
  %998 = vmatpush.msra.mxu0 0.0
  %999 = vmatpush.msra.mxu0 %v986
  %1000 = vmatpush.msra.mxu0 %v984
  %1001 = vmatpush.msra.mxu0 %v982
  %1002 = vmatpush.msra.mxu0 %v980
  %1003 = vmatpush.msra.mxu0 %v978
  %1004 = vmatpush.msra.mxu0 %v976
  %1005 = vmatpush.msra.mxu0 %v974
  %1006 = vmatpush.msra.mxu0 %v972
  %1007 = vmatmul.f32.gmra.mxu0 %v989
  %v1008 = vpop.f32.mrf.mxu0
  %v1009 = vadd.f32 0.0, %v1008
  %1010 = vdwg.mxu0
  %1011 = vmatpush.msra.mxu0 0.0
  %1012 = vmatpush.msra.mxu0 0.0
  %1013 = vmatpush.msra.mxu0 0.0
  %1014 = vmatpush.msra.mxu0 0.0
  %1015 = vmatpush.msra.mxu0 0.0
  %1016 = vmatpush.msra.mxu0 0.0
  %1017 = vmatpush.msra.mxu0 0.0
  %1018 = vmatpush.msra.mxu0 0.0
  %1019 = vmatpush.msra.mxu0 %v987
  %1020 = vmatpush.msra.mxu0 %v985
  %1021 = vmatpush.msra.mxu0 %v983
  %1022 = vmatpush.msra.mxu0 %v981
  %1023 = vmatpush.msra.mxu0 %v979
  %1024 = vmatpush.msra.mxu0 %v977
  %1025 = vmatpush.msra.mxu0 %v975
  %1026 = vmatpush.msra.mxu0 %v973
  %1027 = vmatmul.f32.gmra.mxu0 %v989
  %v1028 = vpop.f32.mrf.mxu0
  %v1029 = vadd.f32 0.0, %v1028
  %1030 = vdwg.mxu0
  %v1031 = vadd.f32 %v969, %v1009
  %v1032 = vadd.f32 %v970, %v1029
  %s1033 = scalar_lea.vmem %s11, 640
  %v1034 = vld [vmem:[%s1033] sm:$0xff]
  %v1035 = vld [vmem:[%s1033 + $0x8] sm:$0xff]
  %v1036 = vld [vmem:[%s1033 + $0x10] sm:$0xff]
  %v1037 = vld [vmem:[%s1033 + $0x18] sm:$0xff]
  %v1038 = vld [vmem:[%s1033 + $0x20] sm:$0xff]
  %v1039 = vld [vmem:[%s1033 + $0x28] sm:$0xff]
  %v1040 = vld [vmem:[%s1033 + $0x30] sm:$0xff]
  %v1041 = vld [vmem:[%s1033 + $0x38] sm:$0xff]
  %v1042 = vld [vmem:[%s1033 + $0x40] sm:$0xff]
  %v1043 = vld [vmem:[%s1033 + $0x48] sm:$0xff]
  %v1044 = vld [vmem:[%s1033 + $0x50] sm:$0xff]
  %v1045 = vld [vmem:[%s1033 + $0x58] sm:$0xff]
  %v1046 = vld [vmem:[%s1033 + $0x60] sm:$0xff]
  %v1047 = vld [vmem:[%s1033 + $0x68] sm:$0xff]
  %v1048 = vld [vmem:[%s1033 + $0x70] sm:$0xff]
  %v1049 = vld [vmem:[%s1033 + $0x78] sm:$0xff]
  %v1051 = vsel %vm131, %v717, 0
  %1053 = vmatpush.msra.mxu0 0.0
  %1054 = vmatpush.msra.mxu0 0.0
  %1055 = vmatpush.msra.mxu0 0.0
  %1056 = vmatpush.msra.mxu0 0.0
  %1057 = vmatpush.msra.mxu0 0.0
  %1058 = vmatpush.msra.mxu0 0.0
  %1059 = vmatpush.msra.mxu0 0.0
  %1060 = vmatpush.msra.mxu0 0.0
  %1061 = vmatpush.msra.mxu0 %v1048
  %1062 = vmatpush.msra.mxu0 %v1046
  %1063 = vmatpush.msra.mxu0 %v1044
  %1064 = vmatpush.msra.mxu0 %v1042
  %1065 = vmatpush.msra.mxu0 %v1040
  %1066 = vmatpush.msra.mxu0 %v1038
  %1067 = vmatpush.msra.mxu0 %v1036
  %1068 = vmatpush.msra.mxu0 %v1034
  %1069 = vmatmul.f32.gmra.mxu0 %v1051
  %v1070 = vpop.f32.mrf.mxu0
  %v1071 = vadd.f32 0.0, %v1070
  %1072 = vdwg.mxu0
  %1073 = vmatpush.msra.mxu0 0.0
  %1074 = vmatpush.msra.mxu0 0.0
  %1075 = vmatpush.msra.mxu0 0.0
  %1076 = vmatpush.msra.mxu0 0.0
  %1077 = vmatpush.msra.mxu0 0.0
  %1078 = vmatpush.msra.mxu0 0.0
  %1079 = vmatpush.msra.mxu0 0.0
  %1080 = vmatpush.msra.mxu0 0.0
  %1081 = vmatpush.msra.mxu0 %v1049
  %1082 = vmatpush.msra.mxu0 %v1047
  %1083 = vmatpush.msra.mxu0 %v1045
  %1084 = vmatpush.msra.mxu0 %v1043
  %1085 = vmatpush.msra.mxu0 %v1041
  %1086 = vmatpush.msra.mxu0 %v1039
  %1087 = vmatpush.msra.mxu0 %v1037
  %1088 = vmatpush.msra.mxu0 %v1035
  %1089 = vmatmul.f32.gmra.mxu0 %v1051
  %v1090 = vpop.f32.mrf.mxu0
  %v1091 = vadd.f32 0.0, %v1090
  %1092 = vdwg.mxu0
  %v1093 = vadd.f32 %v1031, %v1071
  %v1094 = vadd.f32 %v1032, %v1091
  %s1095 = scalar_lea.vmem %s11, 768
  %v1096 = vld [vmem:[%s1095] sm:$0xff]
  %v1097 = vld [vmem:[%s1095 + $0x8] sm:$0xff]
  %v1098 = vld [vmem:[%s1095 + $0x10] sm:$0xff]
  %v1099 = vld [vmem:[%s1095 + $0x18] sm:$0xff]
  %v1100 = vld [vmem:[%s1095 + $0x20] sm:$0xff]
  %v1101 = vld [vmem:[%s1095 + $0x28] sm:$0xff]
  %v1102 = vld [vmem:[%s1095 + $0x30] sm:$0xff]
  %v1103 = vld [vmem:[%s1095 + $0x38] sm:$0xff]
  %v1104 = vld [vmem:[%s1095 + $0x40] sm:$0xff]
  %v1105 = vld [vmem:[%s1095 + $0x48] sm:$0xff]
  %v1106 = vld [vmem:[%s1095 + $0x50] sm:$0xff]
  %v1107 = vld [vmem:[%s1095 + $0x58] sm:$0xff]
  %v1108 = vld [vmem:[%s1095 + $0x60] sm:$0xff]
  %v1109 = vld [vmem:[%s1095 + $0x68] sm:$0xff]
  %v1110 = vld [vmem:[%s1095 + $0x70] sm:$0xff]
  %v1111 = vld [vmem:[%s1095 + $0x78] sm:$0xff]
  %v1113 = vsel %vm131, %v720, 0
  %1115 = vmatpush.msra.mxu0 0.0
  %1116 = vmatpush.msra.mxu0 0.0
  %1117 = vmatpush.msra.mxu0 0.0
  %1118 = vmatpush.msra.mxu0 0.0
  %1119 = vmatpush.msra.mxu0 0.0
  %1120 = vmatpush.msra.mxu0 0.0
  %1121 = vmatpush.msra.mxu0 0.0
  %1122 = vmatpush.msra.mxu0 0.0
  %1123 = vmatpush.msra.mxu0 %v1110
  %1124 = vmatpush.msra.mxu0 %v1108
  %1125 = vmatpush.msra.mxu0 %v1106
  %1126 = vmatpush.msra.mxu0 %v1104
  %1127 = vmatpush.msra.mxu0 %v1102
  %1128 = vmatpush.msra.mxu0 %v1100
  %1129 = vmatpush.msra.mxu0 %v1098
  %1130 = vmatpush.msra.mxu0 %v1096
  %1131 = vmatmul.f32.gmra.mxu0 %v1113
  %v1132 = vpop.f32.mrf.mxu0
  %v1133 = vadd.f32 0.0, %v1132
  %1134 = vdwg.mxu0
  %1135 = vmatpush.msra.mxu0 0.0
  %1136 = vmatpush.msra.mxu0 0.0
  %1137 = vmatpush.msra.mxu0 0.0
  %1138 = vmatpush.msra.mxu0 0.0
  %1139 = vmatpush.msra.mxu0 0.0
  %1140 = vmatpush.msra.mxu0 0.0
  %1141 = vmatpush.msra.mxu0 0.0
  %1142 = vmatpush.msra.mxu0 0.0
  %1143 = vmatpush.msra.mxu0 %v1111
  %1144 = vmatpush.msra.mxu0 %v1109
  %1145 = vmatpush.msra.mxu0 %v1107
  %1146 = vmatpush.msra.mxu0 %v1105
  %1147 = vmatpush.msra.mxu0 %v1103
  %1148 = vmatpush.msra.mxu0 %v1101
  %1149 = vmatpush.msra.mxu0 %v1099
  %1150 = vmatpush.msra.mxu0 %v1097
  %1151 = vmatmul.f32.gmra.mxu0 %v1113
  %v1152 = vpop.f32.mrf.mxu0
  %v1153 = vadd.f32 0.0, %v1152
  %1154 = vdwg.mxu0
  %v1155 = vadd.f32 %v1093, %v1133
  %v1156 = vadd.f32 %v1094, %v1153
  %s1157 = scalar_lea.vmem %s11, 896
  %v1158 = vld [vmem:[%s1157] sm:$0xff]
  %v1159 = vld [vmem:[%s1157 + $0x8] sm:$0xff]
  %v1160 = vld [vmem:[%s1157 + $0x10] sm:$0xff]
  %v1161 = vld [vmem:[%s1157 + $0x18] sm:$0xff]
  %v1162 = vld [vmem:[%s1157 + $0x20] sm:$0xff]
  %v1163 = vld [vmem:[%s1157 + $0x28] sm:$0xff]
  %v1164 = vld [vmem:[%s1157 + $0x30] sm:$0xff]
  %v1165 = vld [vmem:[%s1157 + $0x38] sm:$0xff]
  %v1166 = vld [vmem:[%s1157 + $0x40] sm:$0xff]
  %v1167 = vld [vmem:[%s1157 + $0x48] sm:$0xff]
  %v1168 = vld [vmem:[%s1157 + $0x50] sm:$0xff]
  %v1169 = vld [vmem:[%s1157 + $0x58] sm:$0xff]
  %v1170 = vld [vmem:[%s1157 + $0x60] sm:$0xff]
  %v1171 = vld [vmem:[%s1157 + $0x68] sm:$0xff]
  %v1172 = vld [vmem:[%s1157 + $0x70] sm:$0xff]
  %v1173 = vld [vmem:[%s1157 + $0x78] sm:$0xff]
  %v1175 = vsel %vm131, %v723, 0
  %1177 = vmatpush.msra.mxu0 0.0
  %1178 = vmatpush.msra.mxu0 0.0
  %1179 = vmatpush.msra.mxu0 0.0
  %1180 = vmatpush.msra.mxu0 0.0
  %1181 = vmatpush.msra.mxu0 0.0
  %1182 = vmatpush.msra.mxu0 0.0
  %1183 = vmatpush.msra.mxu0 0.0
  %1184 = vmatpush.msra.mxu0 0.0
  %1185 = vmatpush.msra.mxu0 %v1172
  %1186 = vmatpush.msra.mxu0 %v1170
  %1187 = vmatpush.msra.mxu0 %v1168
  %1188 = vmatpush.msra.mxu0 %v1166
  %1189 = vmatpush.msra.mxu0 %v1164
  %1190 = vmatpush.msra.mxu0 %v1162
  %1191 = vmatpush.msra.mxu0 %v1160
  %1192 = vmatpush.msra.mxu0 %v1158
  %1193 = vmatmul.f32.gmra.mxu0 %v1175
  %v1194 = vpop.f32.mrf.mxu0
  %v1195 = vadd.f32 0.0, %v1194
  %1196 = vdwg.mxu0
  %1197 = vmatpush.msra.mxu0 0.0
  %1198 = vmatpush.msra.mxu0 0.0
  %1199 = vmatpush.msra.mxu0 0.0
  %1200 = vmatpush.msra.mxu0 0.0
  %1201 = vmatpush.msra.mxu0 0.0
  %1202 = vmatpush.msra.mxu0 0.0
  %1203 = vmatpush.msra.mxu0 0.0
  %1204 = vmatpush.msra.mxu0 0.0
  %1205 = vmatpush.msra.mxu0 %v1173
  %1206 = vmatpush.msra.mxu0 %v1171
  %1207 = vmatpush.msra.mxu0 %v1169
  %1208 = vmatpush.msra.mxu0 %v1167
  %1209 = vmatpush.msra.mxu0 %v1165
  %1210 = vmatpush.msra.mxu0 %v1163
  %1211 = vmatpush.msra.mxu0 %v1161
  %1212 = vmatpush.msra.mxu0 %v1159
  %1213 = vmatmul.f32.gmra.mxu0 %v1175
  %v1214 = vpop.f32.mrf.mxu0
  %v1215 = vadd.f32 0.0, %v1214
  %1216 = vdwg.mxu0
  %v1217 = vadd.f32 %v1155, %v1195
  %v1218 = vadd.f32 %v1156, %v1215
  %s1219 = scalar_lea.vmem %s11, 1024
  %v1220 = vld [vmem:[%s1219] sm:$0xff]
  %v1221 = vld [vmem:[%s1219 + $0x8] sm:$0xff]
  %v1222 = vld [vmem:[%s1219 + $0x10] sm:$0xff]
  %v1223 = vld [vmem:[%s1219 + $0x18] sm:$0xff]
  %v1224 = vld [vmem:[%s1219 + $0x20] sm:$0xff]
  %v1225 = vld [vmem:[%s1219 + $0x28] sm:$0xff]
  %v1226 = vld [vmem:[%s1219 + $0x30] sm:$0xff]
  %v1227 = vld [vmem:[%s1219 + $0x38] sm:$0xff]
  %v1228 = vld [vmem:[%s1219 + $0x40] sm:$0xff]
  %v1229 = vld [vmem:[%s1219 + $0x48] sm:$0xff]
  %v1230 = vld [vmem:[%s1219 + $0x50] sm:$0xff]
  %v1231 = vld [vmem:[%s1219 + $0x58] sm:$0xff]
  %v1232 = vld [vmem:[%s1219 + $0x60] sm:$0xff]
  %v1233 = vld [vmem:[%s1219 + $0x68] sm:$0xff]
  %v1234 = vld [vmem:[%s1219 + $0x70] sm:$0xff]
  %v1235 = vld [vmem:[%s1219 + $0x78] sm:$0xff]
  %v1237 = vsel %vm131, %v726, 0
  %1239 = vmatpush.msra.mxu0 0.0
  %1240 = vmatpush.msra.mxu0 0.0
  %1241 = vmatpush.msra.mxu0 0.0
  %1242 = vmatpush.msra.mxu0 0.0
  %1243 = vmatpush.msra.mxu0 0.0
  %1244 = vmatpush.msra.mxu0 0.0
  %1245 = vmatpush.msra.mxu0 0.0
  %1246 = vmatpush.msra.mxu0 0.0
  %1247 = vmatpush.msra.mxu0 %v1234
  %1248 = vmatpush.msra.mxu0 %v1232
  %1249 = vmatpush.msra.mxu0 %v1230
  %1250 = vmatpush.msra.mxu0 %v1228
  %1251 = vmatpush.msra.mxu0 %v1226
  %1252 = vmatpush.msra.mxu0 %v1224
  %1253 = vmatpush.msra.mxu0 %v1222
  %1254 = vmatpush.msra.mxu0 %v1220
  %1255 = vmatmul.f32.gmra.mxu0 %v1237
  %v1256 = vpop.f32.mrf.mxu0
  %v1257 = vadd.f32 0.0, %v1256
  %1258 = vdwg.mxu0
  %1259 = vmatpush.msra.mxu0 0.0
  %1260 = vmatpush.msra.mxu0 0.0
  %1261 = vmatpush.msra.mxu0 0.0
  %1262 = vmatpush.msra.mxu0 0.0
  %1263 = vmatpush.msra.mxu0 0.0
  %1264 = vmatpush.msra.mxu0 0.0
  %1265 = vmatpush.msra.mxu0 0.0
  %1266 = vmatpush.msra.mxu0 0.0
  %1267 = vmatpush.msra.mxu0 %v1235
  %1268 = vmatpush.msra.mxu0 %v1233
  %1269 = vmatpush.msra.mxu0 %v1231
  %1270 = vmatpush.msra.mxu0 %v1229
  %1271 = vmatpush.msra.mxu0 %v1227
  %1272 = vmatpush.msra.mxu0 %v1225
  %1273 = vmatpush.msra.mxu0 %v1223
  %1274 = vmatpush.msra.mxu0 %v1221
  %1275 = vmatmul.f32.gmra.mxu0 %v1237
  %v1276 = vpop.f32.mrf.mxu0
  %v1277 = vadd.f32 0.0, %v1276
  %1278 = vdwg.mxu0
  %v1279 = vadd.f32 %v1217, %v1257
  %v1280 = vadd.f32 %v1218, %v1277
  %v1281 = vld [vmem:[%s12] sm:$0xff]
  %1283 = vset.pattern.permute.xlu0 0
  %1284 = vperm.xlu0 %1283, %v1281
  %v1285 = vpop.permute.xlu0 %1284
  %v1287 = vadd.f32 %v1279, %v1285
  %v1288 = vadd.f32 %v1280, %v1285
  %v1289 = vadd.f32 %v619, %v1287
  %v1290 = vadd.f32 %v620, %v1288
  %1291 = vst [vmem:[%s16] sm:$0xff] %v1289
  %1292 = vst [vmem:[%s16 + $0x8] sm:$0xff] %v1290
  // Predicated region
  $region66: #{scab_forward.1} parent=0 // pred_check
    _
  $region67: #{scab_forward.1} parent=0 // pred_check_branch
    %1294 = sbr.rel (0) target = $region69
  $region68: #{scab_forward.1} parent=0 // pred_region
    _
  $region69: #{scab_forward.1} parent=0 // pred_fallthru
    _
  // Predicated region
  $region70: #{scab_forward.1} parent=0 // pred_check
    _
  $region71: #{scab_forward.1} parent=0 // pred_check_branch
    %1296 = sbr.rel (0) target = $region73
  $region72: #{scab_forward.1} parent=0 // pred_region
    _
  $region73: #{scab_forward.1} parent=0 // pred_fallthru
    _

</llo_original>
